<compile_context>
chip_gen: v7x
topology: tpu7x:2x2x1
jax: 0.10.0
libtpu: 0.0.40
codegen_flags: <defaults>
</compile_context>

<pallas_src>
import numpy as np
import jax
import jax.numpy as jnp
from jax import lax
from jax.experimental import pallas as pl
from jax.experimental.pallas import tpu as pltpu

SENTINEL = 1000000000  # torch writes 1e9 into the flow for outliers


# -----------------------------------------------------------------------------
# Host-side helpers: gaussian blur folded into a dense reflect-padded matrix
# -----------------------------------------------------------------------------
def gaussian_kernel1d(ksize=15, sigma=5.0):
    # kornia.filters.get_gaussian_kernel1d semantics (normalized gaussian)
    x = np.arange(ksize, dtype=np.float64) - ksize // 2
    g = np.exp(-(x ** 2) / (2.0 * sigma ** 2))
    return (g / g.sum()).astype(np.float32)


def _reflect(m, size):
    # torch F.pad(mode='reflect') index mapping (no edge repeat)
    if m < 0:
        return -m
    if m >= size:
        return 2 * (size - 1) - m
    return m


def blur_matrix(size, ksize=15, sigma=5.0):
    """A such that A @ img @ A.T == kornia.gaussian_blur2d(img, 15, 5, 'reflect')."""
    assert size > ksize // 2, "reflect padding needs pad < size"
    g = gaussian_kernel1d(ksize, sigma)
    half = ksize // 2
    A = np.zeros((size, size), dtype=np.float32)
    for i in range(size):
        for d in range(ksize):
            A[i, _reflect(i + d - half, size)] += g[d]
    return A


def _pick_br(size):
    # largest of 32/16/8 that divides size (and leaves >= 2 grid steps)
    for br in (32, 16, 8):
        if size % br == 0 and br < size:
            return br
    return size


# -----------------------------------------------------------------------------
# Fused kernel: geometry (image layout) + one-hot gather + blur + flow finalize
# -----------------------------------------------------------------------------
def pose2flow_kernel(params_ref, d1_ref, d2t_ref, A_ref,
                     uo_ref, vo_ref, ae_ref, uc_ref, vc_ref):
    i = pl.program_id(0)
    nblk = pl.num_programs(0)
    BR, size = d1_ref.shape
    P = lambda k: params_ref[k]                       # scalar reads from SMEM

    if size % 8 == 0:                                 # BR multiple of 8 here
        row0 = pl.multiple_of(i * BR, BR)
        est0 = pl.multiple_of(size + i * BR, 8)
    else:
        row0 = i * BR
        est0 = size + i * BR

    # ------------------ geometry in dense (BR, size) image layout -------------
    rows = (lax.broadcasted_iota(jnp.int32, (BR, size), 0) + row0).astype(jnp.float32)
    cols = lax.broadcasted_iota(jnp.int32, (BR, size), 1).astype(jnp.float32)

    Z1 = d1_ref[...]
    u1 = cols + (P(30) + 0.5)                         # x + bbox1[1] + 0.5
    v1 = rows + (P(29) + 0.5)                         # y + bbox1[0] + 0.5
    X1 = (u1 - P(27)) * (Z1 * P(25))                  # (u1-cx1)*(Z1*(1/fx1))
    Y1 = (v1 - P(28)) * (Z1 * P(26))                  # (v1-cy1)*(Z1*(1/fy1))

    # T = pose2 @ inv(pose1) applied to homogeneous points (coeffs in SMEM)
    X2h = P(0) * X1 + P(1) * Y1 + P(2) * Z1 + P(3)
    Y2h = P(4) * X1 + P(5) * Y1 + P(6) * Z1 + P(7)
    Z2h = P(8) * X1 + P(9) * Y1 + P(10) * Z1 + P(11)
    W2h = P(12) * X1 + P(13) * Y1 + P(14) * Z1 + P(15)
    invW = 1.0 / W2h                                  # one divide, three muls
    X2 = X2h * invW
    Y2 = Y2h * invW
    Z2 = Z2h * invW                                   # estimated depth

    # uv2_hom = intrinsics2 @ XYZ2
    uh = P(16) * X2 + P(17) * Y2 + P(18) * Z2
    vh = P(19) * X2 + P(20) * Y2 + P(21) * Z2
    wh = P(22) * X2 + P(23) * Y2 + P(24) * Z2
    invwh = 1.0 / wh
    u2f = uh * invwh - (P(32) + 0.5)                  # - bbox2[1] - 0.5
    v2f = vh * invwh - (P(31) + 0.5)                  # - bbox2[0] - 0.5
    u2i = u2f.astype(jnp.int32)                       # trunc toward 0 == .long()
    v2i = v2f.astype(jnp.int32)

    oob = jnp.logical_not((u2i >= 0) & (u2i < size) & (v2i >= 0) & (v2i < size))
    u2c = jnp.where(oob, 0, u2i)                      # clamped coords for gather
    v2c = jnp.where(oob, 0, v2i)

    # Sentinel written immediately for out-of-bounds pixels (no mask scratch);
    # those pixels are always outliers in the final torch output anyway.
    uo_ref[pl.ds(row0, BR), :] = jnp.where(oob, SENTINEL, u2i)
    vo_ref[pl.ds(row0, BR), :] = jnp.where(oob, SENTINEL, v2i)
    # Clamped coords stashed in tiny scratch so the fori_loop can read rows.
    uc_ref[...] = u2c
    vc_ref[...] = v2c
    # Estimated depth -> bottom half of the row-stacked [ann; est] slab.
    ae_ref[pl.ds(est0, BR), :] = Z2

    # ------------- gather ann[r,c] = depth2[v2[r,c], u2[r,c]] -----------------
    # Per image row: one-hot (size,size) MXU matmul + fused masked sublane
    # reduce; temporaries stay O(size^2) regardless of image size.  One-hot
    # x value matmuls are exact at default (bf16 multi-pass) precision.
    kiota = lax.broadcasted_iota(jnp.int32, (size, size), 0)
    riota = lax.broadcasted_iota(jnp.int32, (BR, size), 0)

    def gather_row(r, ann_acc):
        v_row = vc_ref[pl.ds(r, 1), :]                              # (1, size)
        u_row = uc_ref[pl.ds(r, 1), :]
        Vh = (kiota == v_row).astype(jnp.float32)                   # one-hot cols
        # rowsT[l, c] = depth2[v_row[c], l]
        rowsT = jnp.dot(d2t_ref[...], Vh, preferred_element_type=jnp.float32)
        # fused select instead of a second f32 one-hot materialization
        ann_row = jnp.sum(jnp.where(kiota == u_row, rowsT, 0.0),
                          axis=0, keepdims=True)                    # (1, size)
        # accumulate into the block carry (single aligned store after the loop)
        return jnp.where(riota == r, ann_row, ann_acc)

    ann_blk = lax.fori_loop(0, BR, gather_row,
                            jnp.zeros((BR, size), jnp.float32))
    ae_ref[pl.ds(row0, BR), :] = ann_blk                            # ann rows

    # ------------- last step: blur both images, finalize the flow -------------
    @pl.when(i == nblk - 1)
    def _():
        A = A_ref[...]
        ae = ae_ref[...]                                            # (2*size, size)
        # horizontal blur of both stacked images in one MXU call: [ann; est] @ A^T
        H = lax.dot_general(ae, A, (((1,), (1,)), ((), ())),
                            preferred_element_type=jnp.float32,
                            precision=lax.Precision.HIGHEST)
        # vertical blur per image (sublane slices at multiples of 8, no concat)
        ann_b = jnp.dot(A, H[:size, :], preferred_element_type=jnp.float32,
                        precision=lax.Precision.HIGHEST)
        est_b = jnp.dot(A, H[size:, :], preferred_element_type=jnp.float32,
                        precision=lax.Precision.HIGHEST)
        oob_full = uo_ref[...] == SENTINEL
        outlier = (jnp.abs(ann_b - est_b) > 0.05) | oob_full
        uo_ref[...] = jnp.where(outlier, SENTINEL, uo_ref[...])
        vo_ref[...] = jnp.where(outlier, SENTINEL, vo_ref[...])


# -----------------------------------------------------------------------------
# Wrapper
# -----------------------------------------------------------------------------
def pose2flow(depth1, intrinsics1, pose1, bbox1, depth2, intrinsics2, pose2,
              bbox2, *, size):
    f32 = jnp.float32

    # tiny 4x4 inverse / chain stays in glue (scalar-size work)
    T = (pose2 @ jnp.linalg.inv(pose1)).astype(f32)
    params = jnp.concatenate([
        T.reshape(-1),                                             # [0:16]
        intrinsics2.astype(f32).reshape(-1),                       # [16:25]
        jnp.stack([1.0 / intrinsics1[0, 0], 1.0 / intrinsics1[1, 1],
                   intrinsics1[0, 2], intrinsics1[1, 2],
                   bbox1[0], bbox1[1], bbox2[0], bbox2[1]]).astype(f32),
    ]).astype(f32)                                                 # (33,)

    d1 = depth1.astype(f32)                                        # (size, size)
    d2t = depth2.astype(f32).T                                     # pre-transposed for gather
    A = jnp.asarray(blur_matrix(size))                             # (size, size)

    BR = _pick_br(size)
    nblk = size // BR

    img = lambda: pl.BlockSpec((size, size), lambda i: (0, 0))

    # size-aware scoped VMEM request (resident set ~24*size^2 B + temporaries);
    # do not blanket-request 64 MiB (v7x physical VMEM per TensorCore).
    vmem_limit = int(min(100 * 1024 * 1024,
                         max(32 * 1024 * 1024, 64 * size * size)))

    uo, vo = pl.pallas_call(
        pose2flow_kernel,
        grid=(nblk,),
        in_specs=[
            pl.BlockSpec(memory_space=pltpu.MemorySpace.SMEM),     # params (scalars)
            pl.BlockSpec((BR, size), lambda i: (i, 0)),            # depth1 row block
            img(),                                                 # depth2^T (resident)
            img(),                                                 # blur matrix (resident)
        ],
        out_specs=(img(), img()),
        out_shape=(jax.ShapeDtypeStruct((size, size), jnp.int32),
                   jax.ShapeDtypeStruct((size, size), jnp.int32)),
        scratch_shapes=[pltpu.VMEM((2 * size, size), jnp.float32),  # [ann ; est] slab
                        pltpu.VMEM((BR, size), jnp.int32),          # clamped u2 rows
                        pltpu.VMEM((BR, size), jnp.int32)],         # clamped v2 rows
        compiler_params=pltpu.CompilerParams(
            # scratch accumulates across steps + last-step blur => "arbitrary"
            dimension_semantics=("arbitrary",),
            vmem_limit_bytes=vmem_limit),
        cost_estimate=pl.CostEstimate(
            flops=2 * size ** 4 + 8 * size ** 3,
            transcendentals=0,
            bytes_accessed=5 * size * size * 4),
    )(params, d1, d2t, A)

    # TODO(synk): torch returns int64 flow; TPU vregs are 32-bit so int32 here.
    return jnp.stack([uo, vo], axis=-1)[None]                      # (1, size, size, 2)


# -----------------------------------------------------------------------------
# Pure-JAX reference (same math/ordering as the kernel, used for a sanity check)
# -----------------------------------------------------------------------------
def pose2flow_ref(depth1, intr1, pose1, bbox1, depth2, intr2, pose2, bbox2, size, A):
    f32 = jnp.float32
    rows = jnp.broadcast_to(jnp.arange(size, dtype=f32)[:, None], (size, size))
    cols = jnp.broadcast_to(jnp.arange(size, dtype=f32)[None, :], (size, size))
    Z1 = depth1.astype(f32)
    u1 = cols + (bbox1[1] + 0.5)
    v1 = rows + (bbox1[0] + 0.5)
    inv_fx1 = 1.0 / intr1[0, 0]
    inv_fy1 = 1.0 / intr1[1, 1]
    X1 = (u1 - intr1[0, 2]) * (Z1 * inv_fx1)
    Y1 = (v1 - intr1[1, 2]) * (Z1 * inv_fy1)
    T = (pose2 @ jnp.linalg.inv(pose1)).astype(f32)
    X2h = T[0, 0] * X1 + T[0, 1] * Y1 + T[0, 2] * Z1 + T[0, 3]
    Y2h = T[1, 0] * X1 + T[1, 1] * Y1 + T[1, 2] * Z1 + T[1, 3]
    Z2h = T[2, 0] * X1 + T[2, 1] * Y1 + T[2, 2] * Z1 + T[2, 3]
    W2h = T[3, 0] * X1 + T[3, 1] * Y1 + T[3, 2] * Z1 + T[3, 3]
    invW = 1.0 / W2h
    X2, Y2, Z2 = X2h * invW, Y2h * invW, Z2h * invW
    uh = intr2[0, 0] * X2 + intr2[0, 1] * Y2 + intr2[0, 2] * Z2
    vh = intr2[1, 0] * X2 + intr2[1, 1] * Y2 + intr2[1, 2] * Z2
    wh = intr2[2, 0] * X2 + intr2[2, 1] * Y2 + intr2[2, 2] * Z2
    invwh = 1.0 / wh
    u2 = (uh * invwh - (bbox2[1] + 0.5)).astype(jnp.int32)
    v2 = (vh * invwh - (bbox2[0] + 0.5)).astype(jnp.int32)
    valid = (u2 >= 0) & (u2 < size) & (v2 >= 0) & (v2 < size)
    outlier0 = jnp.logical_not(valid)
    u2 = jnp.where(outlier0, 0, u2)
    v2 = jnp.where(outlier0, 0, v2)
    ann = depth2[v2, u2]
    est = Z2
    # same association order & precision as the kernel: (X @ A^T) then A @ (.)
    ann_b = jnp.dot(A, jnp.dot(ann, A.T, precision=lax.Precision.HIGHEST),
                    precision=lax.Precision.HIGHEST)
    est_b = jnp.dot(A, jnp.dot(est, A.T, precision=lax.Precision.HIGHEST),
                    precision=lax.Precision.HIGHEST)
    diff = jnp.abs(ann_b - est_b)
    outlier = (diff > 0.05) | outlier0
    u2 = jnp.where(outlier, SENTINEL, u2)
    v2 = jnp.where(outlier, SENTINEL, v2)
    return jnp.stack([u2, v2], axis=-1)[None], diff


# -----------------------------------------------------------------------------
def _make_pose(angle, t):
    c, s = np.cos(angle), np.sin(angle)
    P = np.eye(4, dtype=np.float32)
    P[:3, :3] = np.array([[c, -s, 0.0], [s, c, 0.0], [0.0, 0.0, 1.0]], np.float32)
    P[:3, 3] = np.asarray(t, np.float32)
    return jnp.asarray(P)


if __name__ == "__main__":
    size = 16
    key = jax.random.PRNGKey(0)
    k1, k2 = jax.random.split(key, 2)

    depth1 = jax.random.uniform(k1, (size, size), jnp.float32, 1.0, 5.0)
    depth2 = jax.random.uniform(k2, (size, size), jnp.float32, 1.0, 5.0)
    intrinsics1 = jnp.array([[20.0, 0.0, size / 2.0],
                             [0.0, 20.0, size / 2.0],
                             [0.0, 0.0, 1.0]], jnp.float32)
    intrinsics2 = jnp.array([[22.0, 0.0, size / 2.0 + 0.5],
                             [0.0, 22.0, size / 2.0 - 0.5],
                             [0.0, 0.0, 1.0]], jnp.float32)
    pose1 = _make_pose(0.03, [0.10, -0.05, 0.20])
    pose2 = _make_pose(-0.02, [-0.08, 0.12, 0.15])
    bbox1 = jnp.array([2.0, 3.0, 2.0 + size, 3.0 + size], jnp.float32)
    bbox2 = jnp.array([1.0, 4.0, 1.0 + size, 4.0 + size], jnp.float32)

    flow = pose2flow(depth1, intrinsics1, pose1, bbox1,
                     depth2, intrinsics2, pose2, bbox2, size=size)
    flow = jax.block_until_ready(flow)
    assert flow.shape == (1, size, size, 2) and flow.dtype == jnp.int32

    ref_flow, ref_diff = pose2flow_ref(depth1, intrinsics1, pose1, bbox1,
                                       depth2, intrinsics2, pose2, bbox2, size,
                                       jnp.asarray(blur_matrix(size)))
    ref_flow = jax.block_until_ready(ref_flow)

    # Compare everywhere except pixels whose blur difference sits within float
    # noise of the 0.05 outlier threshold (MXU vs XLA accumulation order).
    stable = np.abs(np.asarray(ref_diff) - 0.05) > 1e-4
    np.testing.assert_array_equal(np.asarray(flow)[0][stable],
                                  np.asarray(ref_flow)[0][stable])

    print("KERNEL_OK")
</pallas_src>

<mosaic_0001>
module attributes {stable_mosaic.version = 11 : i64} {
  func.func @pose2flow_kernel(%arg0: i32, %arg1: memref<33xf32, #tpu.memory_space<smem>>, %arg2: memref<8x16xf32, #tpu.memory_space<vmem>>, %arg3: memref<16x16xf32, #tpu.memory_space<vmem>>, %arg4: memref<16x16xf32, #tpu.memory_space<vmem>>, %arg5: memref<16x16xi32, #tpu.memory_space<vmem>>, %arg6: memref<16x16xi32, #tpu.memory_space<vmem>>, %arg7: memref<32x16xf32, #tpu.memory_space<vmem>>, %arg8: memref<8x16xi32, #tpu.memory_space<vmem>>, %arg9: memref<8x16xi32, #tpu.memory_space<vmem>>) attributes {dimension_semantics = [#tpu.dimension_semantics<arbitrary>], iteration_bounds = array<i64: 2>, scalar_prefetch = 0 : i64, scratch_operands = 3 : i64, tpu.core_type = #tpu.core_type<tc>, window_params = [{transform_indices = @transform_0, window_bounds = array<i64: 33>}, {transform_indices = @transform_1, window_bounds = array<i64: 8, 16>}, {pipeline_mode = #tpu.pipeline_mode<synchronous>, transform_indices = @transform_2, window_bounds = array<i64: 16, 16>}, {pipeline_mode = #tpu.pipeline_mode<synchronous>, transform_indices = @transform_3, window_bounds = array<i64: 16, 16>}, {pipeline_mode = #tpu.pipeline_mode<synchronous>, transform_indices = @transform_4, window_bounds = array<i64: 16, 16>}, {pipeline_mode = #tpu.pipeline_mode<synchronous>, transform_indices = @transform_5, window_bounds = array<i64: 16, 16>}]} {
    %c8_i32 = arith.constant 8 : i32
    %0 = arith.muli %arg0, %c8_i32 : i32
    %1 = tpu.assume_multiple %0, 8 : i32
    %c8_i32_0 = arith.constant 8 : i32
    %2 = arith.muli %arg0, %c8_i32_0 : i32
    %c16_i32 = arith.constant 16 : i32
    %3 = arith.addi %c16_i32, %2 : i32
    %4 = tpu.assume_multiple %3, 8 : i32
    %5 = tpu.iota {dimensions = array<i32: 0>} : vector<8x16xi32>
    %6 = vector.broadcast %1 : i32 to vector<8x16xi32>
    %7 = arith.addi %5, %6 : vector<8x16xi32>
    %8 = arith.sitofp %7 : vector<8x16xi32> to vector<8x16xf32>
    %9 = tpu.iota {dimensions = array<i32: 1>} : vector<8x16xi32>
    %10 = arith.sitofp %9 : vector<8x16xi32> to vector<8x16xf32>
    %c0 = arith.constant 0 : index
    %c0_1 = arith.constant 0 : index
    %11 = vector.load %arg2[%c0, %c0_1] : memref<8x16xf32, #tpu.memory_space<vmem>>, vector<8x16xf32>
    %c30 = arith.constant 30 : index
    %12 = memref.load %arg1[%c30] : memref<33xf32, #tpu.memory_space<smem>>
    %cst = arith.constant 5.000000e-01 : f32
    %13 = arith.addf %12, %cst : f32
    %14 = vector.broadcast %13 : f32 to vector<8x16xf32>
    %15 = arith.addf %10, %14 : vector<8x16xf32>
    %c29 = arith.constant 29 : index
    %16 = memref.load %arg1[%c29] : memref<33xf32, #tpu.memory_space<smem>>
    %cst_2 = arith.constant 5.000000e-01 : f32
    %17 = arith.addf %16, %cst_2 : f32
    %18 = vector.broadcast %17 : f32 to vector<8x16xf32>
    %19 = arith.addf %8, %18 : vector<8x16xf32>
    %c27 = arith.constant 27 : index
    %20 = memref.load %arg1[%c27] : memref<33xf32, #tpu.memory_space<smem>>
    %21 = vector.broadcast %20 : f32 to vector<8x16xf32>
    %22 = arith.subf %15, %21 : vector<8x16xf32>
    %c25 = arith.constant 25 : index
    %23 = memref.load %arg1[%c25] : memref<33xf32, #tpu.memory_space<smem>>
    %24 = vector.broadcast %23 : f32 to vector<8x16xf32>
    %25 = arith.mulf %11, %24 : vector<8x16xf32>
    %26 = arith.mulf %22, %25 : vector<8x16xf32>
    %c28 = arith.constant 28 : index
    %27 = memref.load %arg1[%c28] : memref<33xf32, #tpu.memory_space<smem>>
    %28 = vector.broadcast %27 : f32 to vector<8x16xf32>
    %29 = arith.subf %19, %28 : vector<8x16xf32>
    %c26 = arith.constant 26 : index
    %30 = memref.load %arg1[%c26] : memref<33xf32, #tpu.memory_space<smem>>
    %31 = vector.broadcast %30 : f32 to vector<8x16xf32>
    %32 = arith.mulf %11, %31 : vector<8x16xf32>
    %33 = arith.mulf %29, %32 : vector<8x16xf32>
    %c0_3 = arith.constant 0 : index
    %34 = memref.load %arg1[%c0_3] : memref<33xf32, #tpu.memory_space<smem>>
    %35 = vector.broadcast %34 : f32 to vector<8x16xf32>
    %36 = arith.mulf %35, %26 : vector<8x16xf32>
    %c1 = arith.constant 1 : index
    %37 = memref.load %arg1[%c1] : memref<33xf32, #tpu.memory_space<smem>>
    %38 = vector.broadcast %37 : f32 to vector<8x16xf32>
    %39 = arith.mulf %38, %33 : vector<8x16xf32>
    %40 = arith.addf %36, %39 : vector<8x16xf32>
    %c2 = arith.constant 2 : index
    %41 = memref.load %arg1[%c2] : memref<33xf32, #tpu.memory_space<smem>>
    %42 = vector.broadcast %41 : f32 to vector<8x16xf32>
    %43 = arith.mulf %42, %11 : vector<8x16xf32>
    %44 = arith.addf %40, %43 : vector<8x16xf32>
    %c3 = arith.constant 3 : index
    %45 = memref.load %arg1[%c3] : memref<33xf32, #tpu.memory_space<smem>>
    %46 = vector.broadcast %45 : f32 to vector<8x16xf32>
    %47 = arith.addf %44, %46 : vector<8x16xf32>
    %c4 = arith.constant 4 : index
    %48 = memref.load %arg1[%c4] : memref<33xf32, #tpu.memory_space<smem>>
    %49 = vector.broadcast %48 : f32 to vector<8x16xf32>
    %50 = arith.mulf %49, %26 : vector<8x16xf32>
    %c5 = arith.constant 5 : index
    %51 = memref.load %arg1[%c5] : memref<33xf32, #tpu.memory_space<smem>>
    %52 = vector.broadcast %51 : f32 to vector<8x16xf32>
    %53 = arith.mulf %52, %33 : vector<8x16xf32>
    %54 = arith.addf %50, %53 : vector<8x16xf32>
    %c6 = arith.constant 6 : index
    %55 = memref.load %arg1[%c6] : memref<33xf32, #tpu.memory_space<smem>>
    %56 = vector.broadcast %55 : f32 to vector<8x16xf32>
    %57 = arith.mulf %56, %11 : vector<8x16xf32>
    %58 = arith.addf %54, %57 : vector<8x16xf32>
    %c7 = arith.constant 7 : index
    %59 = memref.load %arg1[%c7] : memref<33xf32, #tpu.memory_space<smem>>
    %60 = vector.broadcast %59 : f32 to vector<8x16xf32>
    %61 = arith.addf %58, %60 : vector<8x16xf32>
    %c8 = arith.constant 8 : index
    %62 = memref.load %arg1[%c8] : memref<33xf32, #tpu.memory_space<smem>>
    %63 = vector.broadcast %62 : f32 to vector<8x16xf32>
    %64 = arith.mulf %63, %26 : vector<8x16xf32>
    %c9 = arith.constant 9 : index
    %65 = memref.load %arg1[%c9] : memref<33xf32, #tpu.memory_space<smem>>
    %66 = vector.broadcast %65 : f32 to vector<8x16xf32>
    %67 = arith.mulf %66, %33 : vector<8x16xf32>
    %68 = arith.addf %64, %67 : vector<8x16xf32>
    %c10 = arith.constant 10 : index
    %69 = memref.load %arg1[%c10] : memref<33xf32, #tpu.memory_space<smem>>
    %70 = vector.broadcast %69 : f32 to vector<8x16xf32>
    %71 = arith.mulf %70, %11 : vector<8x16xf32>
    %72 = arith.addf %68, %71 : vector<8x16xf32>
    %c11 = arith.constant 11 : index
    %73 = memref.load %arg1[%c11] : memref<33xf32, #tpu.memory_space<smem>>
    %74 = vector.broadcast %73 : f32 to vector<8x16xf32>
    %75 = arith.addf %72, %74 : vector<8x16xf32>
    %c12 = arith.constant 12 : index
    %76 = memref.load %arg1[%c12] : memref<33xf32, #tpu.memory_space<smem>>
    %77 = vector.broadcast %76 : f32 to vector<8x16xf32>
    %78 = arith.mulf %77, %26 : vector<8x16xf32>
    %c13 = arith.constant 13 : index
    %79 = memref.load %arg1[%c13] : memref<33xf32, #tpu.memory_space<smem>>
    %80 = vector.broadcast %79 : f32 to vector<8x16xf32>
    %81 = arith.mulf %80, %33 : vector<8x16xf32>
    %82 = arith.addf %78, %81 : vector<8x16xf32>
    %c14 = arith.constant 14 : index
    %83 = memref.load %arg1[%c14] : memref<33xf32, #tpu.memory_space<smem>>
    %84 = vector.broadcast %83 : f32 to vector<8x16xf32>
    %85 = arith.mulf %84, %11 : vector<8x16xf32>
    %86 = arith.addf %82, %85 : vector<8x16xf32>
    %c15 = arith.constant 15 : index
    %87 = memref.load %arg1[%c15] : memref<33xf32, #tpu.memory_space<smem>>
    %88 = vector.broadcast %87 : f32 to vector<8x16xf32>
    %89 = arith.addf %86, %88 : vector<8x16xf32>
    %cst_4 = arith.constant 1.000000e+00 : f32
    %90 = vector.broadcast %cst_4 : f32 to vector<8x16xf32>
    %91 = arith.divf %90, %89 : vector<8x16xf32>
    %92 = arith.mulf %47, %91 : vector<8x16xf32>
    %93 = arith.mulf %61, %91 : vector<8x16xf32>
    %94 = arith.mulf %75, %91 : vector<8x16xf32>
    %c16 = arith.constant 16 : index
    %95 = memref.load %arg1[%c16] : memref<33xf32, #tpu.memory_space<smem>>
    %96 = vector.broadcast %95 : f32 to vector<8x16xf32>
    %97 = arith.mulf %96, %92 : vector<8x16xf32>
    %c17 = arith.constant 17 : index
    %98 = memref.load %arg1[%c17] : memref<33xf32, #tpu.memory_space<smem>>
    %99 = vector.broadcast %98 : f32 to vector<8x16xf32>
    %100 = arith.mulf %99, %93 : vector<8x16xf32>
    %101 = arith.addf %97, %100 : vector<8x16xf32>
    %c18 = arith.constant 18 : index
    %102 = memref.load %arg1[%c18] : memref<33xf32, #tpu.memory_space<smem>>
    %103 = vector.broadcast %102 : f32 to vector<8x16xf32>
    %104 = arith.mulf %103, %94 : vector<8x16xf32>
    %105 = arith.addf %101, %104 : vector<8x16xf32>
    %c19 = arith.constant 19 : index
    %106 = memref.load %arg1[%c19] : memref<33xf32, #tpu.memory_space<smem>>
    %107 = vector.broadcast %106 : f32 to vector<8x16xf32>
    %108 = arith.mulf %107, %92 : vector<8x16xf32>
    %c20 = arith.constant 20 : index
    %109 = memref.load %arg1[%c20] : memref<33xf32, #tpu.memory_space<smem>>
    %110 = vector.broadcast %109 : f32 to vector<8x16xf32>
    %111 = arith.mulf %110, %93 : vector<8x16xf32>
    %112 = arith.addf %108, %111 : vector<8x16xf32>
    %c21 = arith.constant 21 : index
    %113 = memref.load %arg1[%c21] : memref<33xf32, #tpu.memory_space<smem>>
    %114 = vector.broadcast %113 : f32 to vector<8x16xf32>
    %115 = arith.mulf %114, %94 : vector<8x16xf32>
    %116 = arith.addf %112, %115 : vector<8x16xf32>
    %c22 = arith.constant 22 : index
    %117 = memref.load %arg1[%c22] : memref<33xf32, #tpu.memory_space<smem>>
    %118 = vector.broadcast %117 : f32 to vector<8x16xf32>
    %119 = arith.mulf %118, %92 : vector<8x16xf32>
    %c23 = arith.constant 23 : index
    %120 = memref.load %arg1[%c23] : memref<33xf32, #tpu.memory_space<smem>>
    %121 = vector.broadcast %120 : f32 to vector<8x16xf32>
    %122 = arith.mulf %121, %93 : vector<8x16xf32>
    %123 = arith.addf %119, %122 : vector<8x16xf32>
    %c24 = arith.constant 24 : index
    %124 = memref.load %arg1[%c24] : memref<33xf32, #tpu.memory_space<smem>>
    %125 = vector.broadcast %124 : f32 to vector<8x16xf32>
    %126 = arith.mulf %125, %94 : vector<8x16xf32>
    %127 = arith.addf %123, %126 : vector<8x16xf32>
    %cst_5 = arith.constant 1.000000e+00 : f32
    %128 = vector.broadcast %cst_5 : f32 to vector<8x16xf32>
    %129 = arith.divf %128, %127 : vector<8x16xf32>
    %130 = arith.mulf %105, %129 : vector<8x16xf32>
    %c32 = arith.constant 32 : index
    %131 = memref.load %arg1[%c32] : memref<33xf32, #tpu.memory_space<smem>>
    %cst_6 = arith.constant 5.000000e-01 : f32
    %132 = arith.addf %131, %cst_6 : f32
    %133 = vector.broadcast %132 : f32 to vector<8x16xf32>
    %134 = arith.subf %130, %133 : vector<8x16xf32>
    %135 = arith.mulf %116, %129 : vector<8x16xf32>
    %c31 = arith.constant 31 : index
    %136 = memref.load %arg1[%c31] : memref<33xf32, #tpu.memory_space<smem>>
    %cst_7 = arith.constant 5.000000e-01 : f32
    %137 = arith.addf %136, %cst_7 : f32
    %138 = vector.broadcast %137 : f32 to vector<8x16xf32>
    %139 = arith.subf %135, %138 : vector<8x16xf32>
    %140 = arith.fptosi %134 : vector<8x16xf32> to vector<8x16xi32>
    %141 = arith.fptosi %139 : vector<8x16xf32> to vector<8x16xi32>
    %c0_i32 = arith.constant 0 : i32
    %142 = vector.broadcast %c0_i32 : i32 to vector<8x16xi32>
    %143 = arith.cmpi sge, %140, %142 : vector<8x16xi32>
    %c16_i32_8 = arith.constant 16 : i32
    %144 = vector.broadcast %c16_i32_8 : i32 to vector<8x16xi32>
    %145 = arith.cmpi slt, %140, %144 : vector<8x16xi32>
    %146 = arith.andi %143, %145 : vector<8x16xi1>
    %c0_i32_9 = arith.constant 0 : i32
    %147 = vector.broadcast %c0_i32_9 : i32 to vector<8x16xi32>
    %148 = arith.cmpi sge, %141, %147 : vector<8x16xi32>
    %149 = arith.andi %146, %148 : vector<8x16xi1>
    %c16_i32_10 = arith.constant 16 : i32
    %150 = vector.broadcast %c16_i32_10 : i32 to vector<8x16xi32>
    %151 = arith.cmpi slt, %141, %150 : vector<8x16xi32>
    %152 = arith.andi %149, %151 : vector<8x16xi1>
    %cst_11 = arith.constant dense<true> : vector<8x16xi1>
    %153 = arith.xori %152, %cst_11 : vector<8x16xi1>
    %c0_i32_12 = arith.constant 0 : i32
    %154 = vector.broadcast %c0_i32_12 : i32 to vector<8x16xi32>
    %155 = arith.select %153, %154, %140 : vector<8x16xi1>, vector<8x16xi32>
    %c0_i32_13 = arith.constant 0 : i32
    %156 = vector.broadcast %c0_i32_13 : i32 to vector<8x16xi32>
    %157 = arith.select %153, %156, %141 : vector<8x16xi1>, vector<8x16xi32>
    %c1000000000_i32 = arith.constant 1000000000 : i32
    %158 = vector.broadcast %c1000000000_i32 : i32 to vector<8x16xi32>
    %159 = arith.select %153, %158, %140 : vector<8x16xi1>, vector<8x16xi32>
    %160 = arith.index_cast %1 : i32 to index
    %c0_14 = arith.constant 0 : index
    %161 = vector.load %arg5[%160, %c0_14] : memref<16x16xi32, #tpu.memory_space<vmem>>, vector<8x16xi32>
    tpu.vector_store %arg5[%160, %c0_14], %159 {strides = array<i32>} : memref<16x16xi32, #tpu.memory_space<vmem>>, vector<8x16xi32>,
    %c1000000000_i32_15 = arith.constant 1000000000 : i32
    %162 = vector.broadcast %c1000000000_i32_15 : i32 to vector<8x16xi32>
    %163 = arith.select %153, %162, %141 : vector<8x16xi1>, vector<8x16xi32>
    %164 = arith.index_cast %1 : i32 to index
    %c0_16 = arith.constant 0 : index
    %165 = vector.load %arg6[%164, %c0_16] : memref<16x16xi32, #tpu.memory_space<vmem>>, vector<8x16xi32>
    tpu.vector_store %arg6[%164, %c0_16], %163 {strides = array<i32>} : memref<16x16xi32, #tpu.memory_space<vmem>>, vector<8x16xi32>,
    %c0_17 = arith.constant 0 : index
    %c0_18 = arith.constant 0 : index
    %166 = vector.load %arg8[%c0_17, %c0_18] : memref<8x16xi32, #tpu.memory_space<vmem>>, vector<8x16xi32>
    tpu.vector_store %arg8[%c0_17, %c0_18], %155 {strides = array<i32>} : memref<8x16xi32, #tpu.memory_space<vmem>>, vector<8x16xi32>,
    %c0_19 = arith.constant 0 : index
    %c0_20 = arith.constant 0 : index
    %167 = vector.load %arg9[%c0_19, %c0_20] : memref<8x16xi32, #tpu.memory_space<vmem>>, vector<8x16xi32>
    tpu.vector_store %arg9[%c0_19, %c0_20], %157 {strides = array<i32>} : memref<8x16xi32, #tpu.memory_space<vmem>>, vector<8x16xi32>,
    %168 = arith.index_cast %4 : i32 to index
    %c0_21 = arith.constant 0 : index
    %169 = vector.load %arg7[%168, %c0_21] : memref<32x16xf32, #tpu.memory_space<vmem>>, vector<8x16xf32>
    tpu.vector_store %arg7[%168, %c0_21], %94 {strides = array<i32>} : memref<32x16xf32, #tpu.memory_space<vmem>>, vector<8x16xf32>,
    %170 = tpu.iota {dimensions = array<i32: 0>} : vector<16x16xi32>
    %171 = tpu.iota {dimensions = array<i32: 0>} : vector<8x16xi32>
    %cst_22 = arith.constant 0.000000e+00 : f32
    %172 = vector.broadcast %cst_22 : f32 to vector<8x16xf32>
    %c0_i32_23 = arith.constant 0 : i32
    %c8_i32_24 = arith.constant 8 : i32
    %173 = arith.addi %c0_i32_23, %c8_i32_24 : i32
    %c1_i32 = arith.constant 1 : i32
    %174 = scf.for %arg10 = %c0_i32_23 to %173 step %c1_i32 iter_args(%arg11 = %172) -> (vector<8x16xf32>)  : i32 {
      %180 = arith.index_cast %arg10 : i32 to index
      %c0_29 = arith.constant 0 : index
      %181 = vector.load %arg9[%180, %c0_29] : memref<8x16xi32, #tpu.memory_space<vmem>>, vector<1x16xi32>
      %182 = arith.index_cast %arg10 : i32 to index
      %c0_30 = arith.constant 0 : index
      %183 = vector.load %arg8[%182, %c0_30] : memref<8x16xi32, #tpu.memory_space<vmem>>, vector<1x16xi32>
      %184 = vector.broadcast %181 : vector<1x16xi32> to vector<16x16xi32>
      %185 = arith.cmpi eq, %170, %184 : vector<16x16xi32>
      %186 = arith.extui %185 : vector<16x16xi1> to vector<16x16xi32>
      %187 = arith.sitofp %186 : vector<16x16xi32> to vector<16x16xf32>
      %c0_31 = arith.constant 0 : index
      %c0_32 = arith.constant 0 : index
      %188 = vector.load %arg3[%c0_31, %c0_32] : memref<16x16xf32, #tpu.memory_space<vmem>>, vector<16x16xf32>
      %cst_33 = arith.constant dense<0.000000e+00> : vector<16x16xf32>
      %189 = tpu.matmul %188, %187, %cst_33 {dimension_numbers = #tpu.dot_dimension_numbers<[1], [0], [0], [1], [0, 0, 1, 1], [], []>} : vector<16x16xf32>, vector<16x16xf32>, vector<16x16xf32> -> vector<16x16xf32>
      %190 = vector.broadcast %183 : vector<1x16xi32> to vector<16x16xi32>
      %191 = arith.cmpi eq, %170, %190 : vector<16x16xi32>
      %cst_34 = arith.constant 0.000000e+00 : f32
      %192 = vector.broadcast %cst_34 : f32 to vector<16x16xf32>
      %193 = arith.select %191, %189, %192 : vector<16x16xi1>, vector<16x16xf32>
      %cst_35 = arith.constant dense<0.000000e+00> : vector<16xf32>
      %194 = vector.multi_reduction <add>, %193, %cst_35 [0] : vector<16x16xf32> to vector<16xf32>
      %195 = vector.shape_cast %194 : vector<16xf32> to vector<1x16xf32>
      %196 = vector.broadcast %arg10 : i32 to vector<8x16xi32>
      %197 = arith.cmpi eq, %171, %196 : vector<8x16xi32>
      %198 = vector.shape_cast %195 : vector<1x16xf32> to vector<1x16xf32>
      %199 = vector.broadcast %198 : vector<1x16xf32> to vector<8x16xf32>
      %200 = arith.select %197, %199, %arg11 : vector<8x16xi1>, vector<8x16xf32>
      scf.yield %200 : vector<8x16xf32>
    }
    %c8_i32_25 = arith.constant 8 : i32
    %175 = arith.index_cast %1 : i32 to index
    %c0_26 = arith.constant 0 : index
    %176 = vector.load %arg7[%175, %c0_26] : memref<32x16xf32, #tpu.memory_space<vmem>>, vector<8x16xf32>
    tpu.vector_store %arg7[%175, %c0_26], %174 {strides = array<i32>} : memref<32x16xf32, #tpu.memory_space<vmem>>, vector<8x16xf32>,
    %c1_i32_27 = arith.constant 1 : i32
    %177 = arith.cmpi eq, %arg0, %c1_i32_27 : i32
    %178 = arith.extui %177 : i1 to i32
    %c0_i32_28 = arith.constant 0 : i32
    %179 = arith.cmpi ne, %178, %c0_i32_28 : i32
    scf.if %179 {
      %c0_29 = arith.constant 0 : index
      %c0_30 = arith.constant 0 : index
      %180 = vector.load %arg4[%c0_29, %c0_30] : memref<16x16xf32, #tpu.memory_space<vmem>>, vector<16x16xf32>
      %c0_31 = arith.constant 0 : index
      %c0_32 = arith.constant 0 : index
      %181 = vector.load %arg7[%c0_31, %c0_32] : memref<32x16xf32, #tpu.memory_space<vmem>>, vector<32x16xf32>
      %cst_33 = arith.constant dense<0.000000e+00> : vector<32x16xf32>
      %182 = tpu.matmul %181, %180, %cst_33 {dimension_numbers = #tpu.dot_dimension_numbers<[1], [1], [0], [0], [0, 0, 1, 0], [], []>, precision = #tpu.contract_precision<fp32>} : vector<32x16xf32>, vector<16x16xf32>, vector<32x16xf32> -> vector<32x16xf32>
      %183 = vector.extract_strided_slice %182 {offsets = [0, 0], sizes = [16, 16], strides = [1, 1]} : vector<32x16xf32> to vector<16x16xf32>
      %cst_34 = arith.constant dense<0.000000e+00> : vector<16x16xf32>
      %184 = tpu.matmul %180, %183, %cst_34 {dimension_numbers = #tpu.dot_dimension_numbers<[1], [0], [0], [1], [0, 0, 1, 1], [], []>, precision = #tpu.contract_precision<fp32>} : vector<16x16xf32>, vector<16x16xf32>, vector<16x16xf32> -> vector<16x16xf32>
      %185 = vector.extract_strided_slice %182 {offsets = [16, 0], sizes = [16, 16], strides = [1, 1]} : vector<32x16xf32> to vector<16x16xf32>
      %cst_35 = arith.constant dense<0.000000e+00> : vector<16x16xf32>
      %186 = tpu.matmul %180, %185, %cst_35 {dimension_numbers = #tpu.dot_dimension_numbers<[1], [0], [0], [1], [0, 0, 1, 1], [], []>, precision = #tpu.contract_precision<fp32>} : vector<16x16xf32>, vector<16x16xf32>, vector<16x16xf32> -> vector<16x16xf32>
      %c0_36 = arith.constant 0 : index
      %c0_37 = arith.constant 0 : index
      %187 = vector.load %arg5[%c0_36, %c0_37] : memref<16x16xi32, #tpu.memory_space<vmem>>, vector<16x16xi32>
      %c1000000000_i32_38 = arith.constant 1000000000 : i32
      %188 = vector.broadcast %c1000000000_i32_38 : i32 to vector<16x16xi32>
      %189 = arith.cmpi eq, %187, %188 : vector<16x16xi32>
      %190 = arith.subf %184, %186 : vector<16x16xf32>
      %191 = math.absf %190 : vector<16x16xf32>
      %cst_39 = arith.constant 5.000000e-02 : f32
      %192 = vector.broadcast %cst_39 : f32 to vector<16x16xf32>
      %193 = arith.cmpf ogt, %191, %192 : vector<16x16xf32>
      %194 = arith.ori %193, %189 : vector<16x16xi1>
      %c0_40 = arith.constant 0 : index
      %c0_41 = arith.constant 0 : index
      %195 = vector.load %arg5[%c0_40, %c0_41] : memref<16x16xi32, #tpu.memory_space<vmem>>, vector<16x16xi32>
      %c1000000000_i32_42 = arith.constant 1000000000 : i32
      %196 = vector.broadcast %c1000000000_i32_42 : i32 to vector<16x16xi32>
      %197 = arith.select %194, %196, %195 : vector<16x16xi1>, vector<16x16xi32>
      %c0_43 = arith.constant 0 : index
      %c0_44 = arith.constant 0 : index
      %198 = vector.load %arg5[%c0_43, %c0_44] : memref<16x16xi32, #tpu.memory_space<vmem>>, vector<16x16xi32>
      tpu.vector_store %arg5[%c0_43, %c0_44], %197 {strides = array<i32>} : memref<16x16xi32, #tpu.memory_space<vmem>>, vector<16x16xi32>,
      %c0_45 = arith.constant 0 : index
      %c0_46 = arith.constant 0 : index
      %199 = vector.load %arg6[%c0_45, %c0_46] : memref<16x16xi32, #tpu.memory_space<vmem>>, vector<16x16xi32>
      %c1000000000_i32_47 = arith.constant 1000000000 : i32
      %200 = vector.broadcast %c1000000000_i32_47 : i32 to vector<16x16xi32>
      %201 = arith.select %194, %200, %199 : vector<16x16xi1>, vector<16x16xi32>
      %c0_48 = arith.constant 0 : index
      %c0_49 = arith.constant 0 : index
      %202 = vector.load %arg6[%c0_48, %c0_49] : memref<16x16xi32, #tpu.memory_space<vmem>>, vector<16x16xi32>
      tpu.vector_store %arg6[%c0_48, %c0_49], %201 {strides = array<i32>} : memref<16x16xi32, #tpu.memory_space<vmem>>, vector<16x16xi32>,
    } else {
    }
    return
  }
  func.func @transform_0(%arg0: i32) -> i32 {
    %c0_i32 = arith.constant 0 : i32
    %c0_i32_0 = arith.constant 0 : i32
    return %c0_i32 : i32
  }
  func.func @transform_1(%arg0: i32) -> (i32, i32) {
    %c0_i32 = arith.constant 0 : i32
    %c0_i32_0 = arith.constant 0 : i32
    return %arg0, %c0_i32 : i32, i32
  }
  func.func @transform_2(%arg0: i32) -> (i32, i32) {
    %c0_i32 = arith.constant 0 : i32
    %c0_i32_0 = arith.constant 0 : i32
    %c0_i32_1 = arith.constant 0 : i32
    return %c0_i32, %c0_i32_0 : i32, i32
  }
  func.func @transform_3(%arg0: i32) -> (i32, i32) {
    %c0_i32 = arith.constant 0 : i32
    %c0_i32_0 = arith.constant 0 : i32
    %c0_i32_1 = arith.constant 0 : i32
    return %c0_i32, %c0_i32_0 : i32, i32
  }
  func.func @transform_4(%arg0: i32) -> (i32, i32) {
    %c0_i32 = arith.constant 0 : i32
    %c0_i32_0 = arith.constant 0 : i32
    %c0_i32_1 = arith.constant 0 : i32
    return %c0_i32, %c0_i32_0 : i32, i32
  }
  func.func @transform_5(%arg0: i32) -> (i32, i32) {
    %c0_i32 = arith.constant 0 : i32
    %c0_i32_0 = arith.constant 0 : i32
    %c0_i32_1 = arith.constant 0 : i32
    return %c0_i32, %c0_i32_0 : i32, i32
  }
}

</mosaic_0001>

<llo_original>
// kernel: tpu_custom_call.1
$region0: #{tpu_custom_call.1}
  #allocation0 [shape = 'u32[]', space=smem, size = 0x4, offset = 0x4, fixed_abs, tag = 'smem constant byte address 0x4 - core index']
  #allocation1 [shape = 'u32[144,128]{1,0:T(1,128)}', space=vmem, size = 0x12000, scoped, tag = 'internal scratch']
  #allocation2 [shape = 'f32[32,16]{1,0:T(8,128)}', space=vmem, size = 0x4000, scoped, tag = 'scratch operand']
  #allocation3 [shape = 's32[8,16]{1,0:T(8,128)}', space=vmem, size = 0x1000, scoped, tag = 'scratch operand']
  #allocation4 [shape = 's32[8,16]{1,0:T(8,128)}', space=vmem, size = 0x1000, scoped, tag = 'scratch operand']
  %s0 = inlined_call_operand.hbm [shape: f32[33], index: 0, kind: input, shape index: {}]
  %s1 = inlined_call_operand.hbm [shape: f32[16,16], index: 1, kind: input, shape index: {}]
  %s2 = inlined_call_operand.hbm [shape: f32[16,16], index: 2, kind: input, shape index: {}]
  %s3 = inlined_call_operand.hbm [shape: f32[16,16], index: 3, kind: input, shape index: {}]
  %s4 = inlined_call_operand.hbm [shape: s32[16,16], index: 4, kind: output, shape index: {0}]
  %s5 = inlined_call_operand.hbm [shape: s32[16,16], index: 5, kind: output, shape index: {1}]
  %6 = xla_tuple %s4, %s5
  %s7 = sld [smem:[#allocation0]]
  $region84: #{tpu_custom_call.1} parent=0
    _
  %s9 = ssub.s32 1, %s7
  %s10 = scalar_select 0, %s9, %s7
  $region1: #{tpu_custom_call.1} parent=0
    #allocation5 [shape = 'u8[512]{0}', space=smem, size = 0x200, scoped, tag = 'input window, operand 0, single buffered']
    #allocation6 [shape = 's32[2]{0}', space=sflag, size = 0x8, scoped, tag = 'scoped memory for tpu_custom_call.1']
    #allocation7 [shape = 's32[2]{0}', space=sflag, size = 0x8, scoped, tag = 'scoped memory for tpu_custom_call.1']
    #allocation8 [shape = 's32[2]{0}', space=sflag, size = 0x8, scoped, tag = 'scoped memory for tpu_custom_call.1']
    #allocation9 [shape = 'u8[8192]{0}', space=vmem, size = 0x2000, scoped, tag = 'input window, operand 1']
    #allocation10 [shape = 'u8[8192]{0}', space=vmem, size = 0x2000, scoped, tag = 'input window, operand 2, single buffered']
    #allocation11 [shape = 's32[1]{0}', space=sflag, size = 0x4, scoped, tag = 'scoped memory for tpu_custom_call.1']
    #allocation12 [shape = 'u8[8192]{0}', space=vmem, size = 0x2000, scoped, tag = 'input window, operand 3, single buffered']
    #allocation13 [shape = 'u8[8192]{0}', space=vmem, size = 0x2000, scoped, tag = 'output window, operand 0, single buffered']
    #allocation14 [shape = 'u8[8192]{0}', space=vmem, size = 0x2000, scoped, tag = 'output window, operand 1, single buffered']
    #allocation15 [shape = 's32[1]{0}', space=sflag, size = 0x4, scoped, tag = 'scoped memory for tpu_custom_call.1']
    %11 = vsyncpa [#allocation8], 0
    %12 = vsyncpa [#allocation6], 0
    %s13 = scalar_lea.sflag [#allocation6], 1
    %14 = vsyncpa %s13, 0
    %15 = vsyncpa [#allocation11], 0
    %16 = vsyncpa [#allocation7], 0
    %17 = vsyncpa [#allocation15], 0
    loop: start=0, step=1, limit=4
    $region2: #{tpu_custom_call.1} parent=1 // loop_pre_header
      _
    $region3: #{tpu_custom_call.1} parent=1 // loop_header
      %s19 = sphi 0, %s23
      %p20 = scmp.ge.s32.totalorder %s19, 4
      %s27 = sphi 0, %s27
      %s29 = sphi 0, %s27
      %s30 = sphi 0, %s29
      %s44 = sphi 0, %s30
      %s50 = sphi 0, %s52
      %s53 = sphi 0, %s50
      %s54 = sphi 0, %s53
      %s70 = sphi 0, %s54
      %s74 = sphi 0, %s74
      %s76 = sphi 0, %s74
      %s77 = sphi 0, %s76
      %s91 = sphi 0, %s77
      %s95 = sphi 0, %s95
      %s97 = sphi 0, %s95
      %s98 = sphi 0, %s97
      %s112 = sphi 0, %s98
      %s116 = sphi 0, %s116
      %s118 = sphi 0, %s116
      %s119 = sphi 0, %s118
      %s133 = sphi 0, %s119
      %s137 = sphi 0, %s137
      %s139 = sphi 0, %s137
      %s140 = sphi 0, %s139
      %s154 = sphi 0, %s140
    $region4: #{tpu_custom_call.1} parent=1 // loop_header_branch
      %22 = sbr.rel (%p20) target = $region8
    $region5: #{tpu_custom_call.1} parent=1 // loop_body
      %s24 = ssub.s32 %s19, 1
      %s25 = ssub.s32 %s19, 2
      %s26 = sadd.s32 %s19, 1
      %s28 = sadd.s32 %s27, 1
      %p31 = scmp.eq.s32.totalorder %s19, 1
      %p32 = scmp.ne.s32.totalorder %s27, %s29
      %p33 = scmp.eq.s32.totalorder %s19, 0
      %p34 = por %p32, %p33
      %p35 = scmp.ne.s32.totalorder %s27, %s29
      %p36 = scmp.eq.s32.totalorder %s24, 1
      %p37 = por %p35, %p36
      %p38 = scmp.ne.s32.totalorder %s29, %s30
      %p39 = scmp.eq.s32.totalorder %s24, 0
      %p40 = por %p38, %p39
      %p41 = scmp.ne.s32.totalorder %s29, %s30
      %p42 = scmp.eq.s32.totalorder %s25, 1
      %p43 = por %p41, %p42
      %p45 = scmp.ne.s32.totalorder %s30, %s44
      %p46 = scmp.eq.s32.totalorder %s25, 0
      %p47 = por %p45, %p46
      %s48 = ssub.s32 %s19, %s26
      %p49 = scmp.eq.s32.totalorder %s48, 0
      %s51 = sadd.s32 %s50, 1
      %s52 = scalar_select %p49, %s50, %s51
      %p55 = pneg %p49
      %p56 = scmp.eq.s32.totalorder %s19, 1
      %p57 = por %p55, %p56
      %p58 = scmp.ne.s32.totalorder %s50, %s53
      %p59 = scmp.eq.s32.totalorder %s19, 0
      %p60 = por %p58, %p59
      %p61 = scmp.ne.s32.totalorder %s50, %s53
      %p62 = scmp.eq.s32.totalorder %s24, 1
      %p63 = por %p61, %p62
      %p64 = scmp.ne.s32.totalorder %s53, %s54
      %p65 = scmp.eq.s32.totalorder %s24, 0
      %p66 = por %p64, %p65
      %p67 = scmp.ne.s32.totalorder %s53, %s54
      %p68 = scmp.eq.s32.totalorder %s25, 1
      %p69 = por %p67, %p68
      %p71 = scmp.ne.s32.totalorder %s54, %s70
      %p72 = scmp.eq.s32.totalorder %s25, 0
      %p73 = por %p71, %p72
      %s75 = sadd.s32 %s74, 1
      %p78 = scmp.eq.s32.totalorder %s19, 1
      %p79 = scmp.ne.s32.totalorder %s74, %s76
      %p80 = scmp.eq.s32.totalorder %s19, 0
      %p81 = por %p79, %p80
      %p82 = scmp.ne.s32.totalorder %s74, %s76
      %p83 = scmp.eq.s32.totalorder %s24, 1
      %p84 = por %p82, %p83
      %p85 = scmp.ne.s32.totalorder %s76, %s77
      %p86 = scmp.eq.s32.totalorder %s24, 0
      %p87 = por %p85, %p86
      %p88 = scmp.ne.s32.totalorder %s76, %s77
      %p89 = scmp.eq.s32.totalorder %s25, 1
      %p90 = por %p88, %p89
      %p92 = scmp.ne.s32.totalorder %s77, %s91
      %p93 = scmp.eq.s32.totalorder %s25, 0
      %p94 = por %p92, %p93
      %s96 = sadd.s32 %s95, 1
      %p99 = scmp.eq.s32.totalorder %s19, 1
      %p100 = scmp.ne.s32.totalorder %s95, %s97
      %p101 = scmp.eq.s32.totalorder %s19, 0
      %p102 = por %p100, %p101
      %p103 = scmp.ne.s32.totalorder %s95, %s97
      %p104 = scmp.eq.s32.totalorder %s24, 1
      %p105 = por %p103, %p104
      %p106 = scmp.ne.s32.totalorder %s97, %s98
      %p107 = scmp.eq.s32.totalorder %s24, 0
      %p108 = por %p106, %p107
      %p109 = scmp.ne.s32.totalorder %s97, %s98
      %p110 = scmp.eq.s32.totalorder %s25, 1
      %p111 = por %p109, %p110
      %p113 = scmp.ne.s32.totalorder %s98, %s112
      %p114 = scmp.eq.s32.totalorder %s25, 0
      %p115 = por %p113, %p114
      %s117 = sadd.s32 %s116, 1
      %p120 = scmp.eq.s32.totalorder %s19, 1
      %p121 = scmp.ne.s32.totalorder %s116, %s118
      %p122 = scmp.eq.s32.totalorder %s19, 0
      %p123 = por %p121, %p122
      %p124 = scmp.ne.s32.totalorder %s116, %s118
      %p125 = scmp.eq.s32.totalorder %s24, 1
      %p126 = por %p124, %p125
      %p127 = scmp.ne.s32.totalorder %s118, %s119
      %p128 = scmp.eq.s32.totalorder %s24, 0
      %p129 = por %p127, %p128
      %p130 = scmp.ne.s32.totalorder %s118, %s119
      %p131 = scmp.eq.s32.totalorder %s25, 1
      %p132 = por %p130, %p131
      %p134 = scmp.ne.s32.totalorder %s119, %s133
      %p135 = scmp.eq.s32.totalorder %s25, 0
      %p136 = por %p134, %p135
      %s138 = sadd.s32 %s137, 1
      %p141 = scmp.eq.s32.totalorder %s19, 1
      %p142 = scmp.ne.s32.totalorder %s137, %s139
      %p143 = scmp.eq.s32.totalorder %s19, 0
      %p144 = por %p142, %p143
      %p145 = scmp.ne.s32.totalorder %s137, %s139
      %p146 = scmp.eq.s32.totalorder %s24, 1
      %p147 = por %p145, %p146
      %p148 = scmp.ne.s32.totalorder %s139, %s140
      %p149 = scmp.eq.s32.totalorder %s24, 0
      %p150 = por %p148, %p149
      %p151 = scmp.ne.s32.totalorder %s139, %s140
      %p152 = scmp.eq.s32.totalorder %s25, 1
      %p153 = por %p151, %p152
      %p155 = scmp.ne.s32.totalorder %s140, %s154
      %p156 = scmp.eq.s32.totalorder %s25, 0
      %p157 = por %p155, %p156
      %p158 = scmp.le.s32.totalorder 1, %s19
      %p159 = scmp.lt.s32.totalorder %s19, 3
      %p160 = pnand %p158, %p159
      %p161 = pneg %p160
      // Predicated region
      $region9: #{tpu_custom_call.1} parent=5 // pred_check
        _
      $region10: #{tpu_custom_call.1} parent=5 // pred_check_branch
        %163 = sbr.rel (%p160) target = $region12
      $region11: #{tpu_custom_call.1} parent=5 // pred_region
        %s164 = ssub.s32 %s19, 1
        // Predicated region
        $region13: #{tpu_custom_call.1} parent=11 // pred_check
          %p165 = pneg %p40
        $region14: #{tpu_custom_call.1} parent=11 // pred_check_branch
          %167 = sbr.rel (%p165) target = $region16
        $region15: #{tpu_custom_call.1} parent=11 // pred_region
          %s169 = ssub.s32 16, 16
          %170 = vsyncadd [#allocation8], %s169
          %173 = dma.hbm_to_smem %s0, 16, [#allocation5], [#allocation8]
        $region16: #{tpu_custom_call.1} parent=11 // pred_fallthru
          _
        // Predicated region
        $region17: #{tpu_custom_call.1} parent=11 // pred_check
          %p174 = pneg %p87
        $region18: #{tpu_custom_call.1} parent=11 // pred_check_branch
          %176 = sbr.rel (%p174) target = $region20
        $region19: #{tpu_custom_call.1} parent=11 // pred_region
          %s178 = ssub.s32 256, 256
          %179 = vsyncadd [#allocation11], %s178
          %s180 = sshll.u32 [#allocation10], 4
          %s181 = int_to_ptr.vmem [resolvable:$true] %s180
          %186 = dma.hbm_to_vmem [thread:$0]  %s2, 256, %s181, [#allocation11], 128, 128, 8
        $region20: #{tpu_custom_call.1} parent=11 // pred_fallthru
          _
        // Predicated region
        $region21: #{tpu_custom_call.1} parent=11 // pred_check
          %p187 = pneg %p108
        $region22: #{tpu_custom_call.1} parent=11 // pred_check_branch
          %189 = sbr.rel (%p187) target = $region24
        $region23: #{tpu_custom_call.1} parent=11 // pred_region
          %s191 = ssub.s32 256, 256
          %192 = vsyncadd [#allocation11], %s191
          %s193 = sshll.u32 [#allocation12], 4
          %s194 = int_to_ptr.vmem [resolvable:$true] %s193
          %199 = dma.hbm_to_vmem [thread:$0]  %s3, 256, %s194, [#allocation11], 128, 128, 8
        $region24: #{tpu_custom_call.1} parent=11 // pred_fallthru
          _
      $region12: #{tpu_custom_call.1} parent=5 // pred_fallthru
        _
      %p200 = scmp.lt.s32.totalorder %s19, 2
      // Predicated region
      $region25: #{tpu_custom_call.1} parent=5 // pred_check
        %p201 = pneg %p200
      $region26: #{tpu_custom_call.1} parent=5 // pred_check_branch
        %203 = sbr.rel (%p201) target = $region28
      $region27: #{tpu_custom_call.1} parent=5 // pred_region
        // Predicated region
        $region29: #{tpu_custom_call.1} parent=27 // pred_check
          %p204 = pneg %p60
        $region30: #{tpu_custom_call.1} parent=27 // pred_check_branch
          %206 = sbr.rel (%p204) target = $region32
        $region31: #{tpu_custom_call.1} parent=27 // pred_region
          %s207 = sand.u32 %s50, 1
          %s208 = scalar_lea.sflag [#allocation6], %s207
          %s209 = sand.u32 %s50, 1
          %s210 = smul.addr %s209, 8
          %s211 = scalar_lea.vmem [#allocation9], %s210
          %s213 = ssub.s32 128, 128
          %214 = vsyncadd %s208, %s213
          %s215 = smul.addr %s19, 128
          %s216 = scalar_lea.hbm %s1, %s215
          %s218 = sshll.u32 %s211, 4
          %s219 = int_to_ptr.vmem [resolvable:$true] %s218
          %221 = dma.hbm_to_vmem [thread:$0]  %s216, 128, %s219, %s208
        $region32: #{tpu_custom_call.1} parent=27 // pred_fallthru
          _
      $region28: #{tpu_custom_call.1} parent=5 // pred_fallthru
        _
      %p222 = scmp.le.s32.totalorder 1, %s19
      %p223 = scmp.lt.s32.totalorder %s19, 3
      %p224 = pnand %p222, %p223
      %p225 = pneg %p224
      // Predicated region
      $region33: #{tpu_custom_call.1} parent=5 // pred_check
        _
      $region34: #{tpu_custom_call.1} parent=5 // pred_check_branch
        %227 = sbr.rel (%p224) target = $region36
      $region35: #{tpu_custom_call.1} parent=5 // pred_region
        %s228 = ssub.s32 %s19, 1
        // Predicated region
        $region37: #{tpu_custom_call.1} parent=35 // pred_check
          %p229 = pneg %p40
        $region38: #{tpu_custom_call.1} parent=35 // pred_check_branch
          %231 = sbr.rel (%p229) target = $region40
        $region39: #{tpu_custom_call.1} parent=35 // pred_region
          %232 = dma.done [#allocation8], 16
        $region40: #{tpu_custom_call.1} parent=35 // pred_fallthru
          _
        %s233 = sand.u32 %s53, 1
        %s234 = scalar_lea.sflag [#allocation6], %s233
        %s235 = sand.u32 %s53, 1
        %s236 = smul.addr %s235, 8
        %s237 = scalar_lea.vmem [#allocation9], %s236
        // Predicated region
        $region41: #{tpu_custom_call.1} parent=35 // pred_check
          %p238 = pneg %p66
        $region42: #{tpu_custom_call.1} parent=35 // pred_check_branch
          %240 = sbr.rel (%p238) target = $region44
        $region43: #{tpu_custom_call.1} parent=35 // pred_region
          %241 = dma.done %s234, 128
        $region44: #{tpu_custom_call.1} parent=35 // pred_fallthru
          _
        // Predicated region
        $region45: #{tpu_custom_call.1} parent=35 // pred_check
          %p242 = pneg %p87
        $region46: #{tpu_custom_call.1} parent=35 // pred_check_branch
          %244 = sbr.rel (%p242) target = $region48
        $region47: #{tpu_custom_call.1} parent=35 // pred_region
          %245 = dma.done [#allocation11], 256
        $region48: #{tpu_custom_call.1} parent=35 // pred_fallthru
          _
        // Predicated region
        $region49: #{tpu_custom_call.1} parent=35 // pred_check
          %p246 = pneg %p108
        $region50: #{tpu_custom_call.1} parent=35 // pred_check_branch
          %248 = sbr.rel (%p246) target = $region52
        $region51: #{tpu_custom_call.1} parent=35 // pred_region
          %249 = dma.done [#allocation11], 256
        $region52: #{tpu_custom_call.1} parent=35 // pred_fallthru
          _
        %250 = sfence
        %p251 = pneg %p40
        %p252 = pneg %p37
        %s253 = sand.u32 %s53, 1
        %s254 = scalar_lea.sflag [#allocation6], %s253
        %s255 = sand.u32 %s53, 1
        %s256 = smul.addr %s255, 8
        %s257 = scalar_lea.vmem [#allocation9], %s256
        %p258 = pneg %p66
        %p259 = pneg %p63
        %p260 = pneg %p87
        %p261 = pneg %p84
        %p262 = pneg %p108
        %p263 = pneg %p105
        %p264 = pneg %p129
        %p265 = pneg %p126
        %p266 = pneg %p150
        %p267 = pneg %p147
        %s268 = smul.u32 %s24, 8
        %s269 = sadd.s32 %s268, 16
        %v270 = vlaneseq
        %v271 = vshrl.u32 %v270, 7
        %v272 = vstv %s268
        %v273 = vadd.s32 %v271, %v272
        %v274 = vcvt.s32.f32 %v273
        %v275 = vlaneseq
        %v276 = vand.u32 %v275, 127
        %v277 = vcvt.s32.f32 %v276
        %v278 = vld [vmem:[%s237] sm:$0xff]
        %s279 = sld [smem:[#allocation5 + $0x1e]]
        %s280 = sadd.f32 %s279, 0.5
        %v281 = vstv %s280
        %v282 = vadd.f32 %v277, %v281
        %s283 = sld [smem:[#allocation5 + $0x1d]]
        %s284 = sadd.f32 %s283, 0.5
        %v285 = vstv %s284
        %v286 = vadd.f32 %v274, %v285
        %s287 = sld [smem:[#allocation5 + $0x1b]]
        %v288 = vstv %s287
        %v289 = vsub.f32 %v282, %v288
        %s290 = sld [smem:[#allocation5 + $0x19]]
        %v291 = vstv %s290
        %v292 = vmul.f32 %v278, %v291
        %v293 = vmul.f32 %v289, %v292
        %s294 = sld [smem:[#allocation5 + $0x1c]]
        %v295 = vstv %s294
        %v296 = vsub.f32 %v286, %v295
        %s297 = sld [smem:[#allocation5 + $0x1a]]
        %v298 = vstv %s297
        %v299 = vmul.f32 %v278, %v298
        %v300 = vmul.f32 %v296, %v299
        %s301 = sld [smem:[#allocation5]]
        %v302 = vstv %s301
        %v303 = vmul.f32 %v302, %v293
        %s304 = sld [smem:[#allocation5 + $0x1]]
        %v305 = vstv %s304
        %v306 = vmul.f32 %v305, %v300
        %v307 = vadd.f32 %v303, %v306
        %s308 = sld [smem:[#allocation5 + $0x2]]
        %v309 = vstv %s308
        %v310 = vmul.f32 %v309, %v278
        %v311 = vadd.f32 %v307, %v310
        %s312 = sld [smem:[#allocation5 + $0x3]]
        %v313 = vstv %s312
        %v314 = vadd.f32 %v311, %v313
        %s315 = sld [smem:[#allocation5 + $0x4]]
        %v316 = vstv %s315
        %v317 = vmul.f32 %v316, %v293
        %s318 = sld [smem:[#allocation5 + $0x5]]
        %v319 = vstv %s318
        %v320 = vmul.f32 %v319, %v300
        %v321 = vadd.f32 %v317, %v320
        %s322 = sld [smem:[#allocation5 + $0x6]]
        %v323 = vstv %s322
        %v324 = vmul.f32 %v323, %v278
        %v325 = vadd.f32 %v321, %v324
        %s326 = sld [smem:[#allocation5 + $0x7]]
        %v327 = vstv %s326
        %v328 = vadd.f32 %v325, %v327
        %s329 = sld [smem:[#allocation5 + $0x8]]
        %v330 = vstv %s329
        %v331 = vmul.f32 %v330, %v293
        %s332 = sld [smem:[#allocation5 + $0x9]]
        %v333 = vstv %s332
        %v334 = vmul.f32 %v333, %v300
        %v335 = vadd.f32 %v331, %v334
        %s336 = sld [smem:[#allocation5 + $0xa]]
        %v337 = vstv %s336
        %v338 = vmul.f32 %v337, %v278
        %v339 = vadd.f32 %v335, %v338
        %s340 = sld [smem:[#allocation5 + $0xb]]
        %v341 = vstv %s340
        %v342 = vadd.f32 %v339, %v341
        %s343 = sld [smem:[#allocation5 + $0xc]]
        %v344 = vstv %s343
        %v345 = vmul.f32 %v344, %v293
        %s346 = sld [smem:[#allocation5 + $0xd]]
        %v347 = vstv %s346
        %v348 = vmul.f32 %v347, %v300
        %v349 = vadd.f32 %v345, %v348
        %s350 = sld [smem:[#allocation5 + $0xe]]
        %v351 = vstv %s350
        %v352 = vmul.f32 %v351, %v278
        %v353 = vadd.f32 %v349, %v352
        %s354 = sld [smem:[#allocation5 + $0xf]]
        %v355 = vstv %s354
        %v356 = vadd.f32 %v353, %v355
        %v357 = vrcp.pop %v356
        %v358 = vmul.f32 1.0, %v357
        %v359 = vmul.f32 %v314, %v358
        %v360 = vmul.f32 %v328, %v358
        %v361 = vmul.f32 %v342, %v358
        %s362 = sld [smem:[#allocation5 + $0x10]]
        %v363 = vstv %s362
        %v364 = vmul.f32 %v363, %v359
        %s365 = sld [smem:[#allocation5 + $0x11]]
        %v366 = vstv %s365
        %v367 = vmul.f32 %v366, %v360
        %v368 = vadd.f32 %v364, %v367
        %s369 = sld [smem:[#allocation5 + $0x12]]
        %v370 = vstv %s369
        %v371 = vmul.f32 %v370, %v361
        %v372 = vadd.f32 %v368, %v371
        %s373 = sld [smem:[#allocation5 + $0x13]]
        %v374 = vstv %s373
        %v375 = vmul.f32 %v374, %v359
        %s376 = sld [smem:[#allocation5 + $0x14]]
        %v377 = vstv %s376
        %v378 = vmul.f32 %v377, %v360
        %v379 = vadd.f32 %v375, %v378
        %s380 = sld [smem:[#allocation5 + $0x15]]
        %v381 = vstv %s380
        %v382 = vmul.f32 %v381, %v361
        %v383 = vadd.f32 %v379, %v382
        %s384 = sld [smem:[#allocation5 + $0x16]]
        %v385 = vstv %s384
        %v386 = vmul.f32 %v385, %v359
        %s387 = sld [smem:[#allocation5 + $0x17]]
        %v388 = vstv %s387
        %v389 = vmul.f32 %v388, %v360
        %v390 = vadd.f32 %v386, %v389
        %s391 = sld [smem:[#allocation5 + $0x18]]
        %v392 = vstv %s391
        %v393 = vmul.f32 %v392, %v361
        %v394 = vadd.f32 %v390, %v393
        %v395 = vrcp.pop %v394
        %v396 = vmul.f32 1.0, %v395
        %v397 = vmul.f32 %v372, %v396
        %s398 = sld [smem:[#allocation5 + $0x20]]
        %s399 = sadd.f32 %s398, 0.5
        %v400 = vstv %s399
        %v401 = vsub.f32 %v397, %v400
        %v402 = vmul.f32 %v383, %v396
        %s403 = sld [smem:[#allocation5 + $0x1f]]
        %s404 = sadd.f32 %s403, 0.5
        %v405 = vstv %s404
        %v406 = vsub.f32 %v402, %v405
        %v407 = vcvt.f32.s32.to.zero.pseudo %v401
        %v408 = vcvt.f32.s32.to.zero.pseudo %v406
        %vm409 = vcmp.ge.s32.totalorder %v407, 0
        %vm410 = vcmp.lt.s32.totalorder %v407, 16
        %vm411 = vmand %vm409, %vm410
        %vm412 = vcmp.ge.s32.totalorder %v408, 0
        %vm413 = vmand %vm411, %vm412
        %vm414 = vcmp.lt.s32.totalorder %v408, 16
        %vm415 = vmand %vm413, %vm414
        %vm416 = vmxor %vm415, 1
        %v417 = vsel %vm416, 0, %v407
        %v418 = vsel %vm416, 0, %v408
        %v419 = vsel %vm416, 1000000000, %v407
        %s420 = scalar_lea.vmem [#allocation13], %s268
        %vm421 = vcmask 130048
        %422 = vst.msk [vmem:[%s420] sm:$0xff] %vm421, %v419
        %v423 = vsel %vm416, 1000000000, %v408
        %s424 = scalar_lea.vmem [#allocation14], %s268
        %425 = vst.msk [vmem:[%s424] sm:$0xff] %vm421, %v423
        %426 = vst.msk [vmem:[#allocation3] sm:$0xff] %vm421, %v417
        %427 = vst.msk [vmem:[#allocation4] sm:$0xff] %vm421, %v418
        %s428 = scalar_lea.vmem [#allocation2], %s269
        %429 = vst.msk [vmem:[%s428] sm:$0xff] %vm421, %v361
        %v430 = vadd.s32 %v271, 8
        loop: start=0, step=1, limit=8
        $region53: #{tpu_custom_call.1} parent=35 // loop_pre_header
          _
        $region54: #{tpu_custom_call.1} parent=35 // loop_header
          %s432 = sphi 0, %s436
          %p433 = scmp.ge.s32.totalorder %s432, 8
          %v437 = vphi 0.0, %v554
        $region55: #{tpu_custom_call.1} parent=35 // loop_header_branch
          %435 = sbr.rel (%p433) target = $region59
        $region56: #{tpu_custom_call.1} parent=35 // loop_body
          %s438 = scalar_lea.vmem [#allocation4], %s432
          %v439 = vld [vmem:[%s438] sm:$0x1]
          %s440 = scalar_lea.vmem [#allocation3], %s432
          %v441 = vld [vmem:[%s440] sm:$0x1]
          %v442 = vlaneseq
          %v443 = vshrl.u32 %v442, 7
          %v444 = vsub.s32 0, %v443
          %v445 = vrot.slane %v439, %v444
          %vm446 = vcmp.eq.s32.totalorder %v271, %v445
          %vm447 = vcmp.eq.s32.totalorder %v430, %v445
          %v448 = vsel %vm446, 1, 0
          %v449 = vsel %vm447, 1, 0
          %v450 = vcvt.s32.f32 %v448
          %v451 = vcvt.s32.f32 %v449
          %v452 = vld [vmem:[#allocation10] sm:$0xff]
          %v453 = vld [vmem:[#allocation10 + $0x8] sm:$0xff]
          %v455 = vsel %vm421, %v452, 0
          %v458 = vsel %vm421, %v453, 0
          %460 = vmatprep.subr.mxu0 0.0
          %461 = vmatpush1.msra.mxu0 %v450
          %462 = vmatprep.subr.mxu0 0.0
          %463 = vmatpush1.msra.mxu0 %v451
          %464 = vmatprep.subr.mxu0 0.0
          %465 = vmatpush1.msra.mxu0 0.0
          %466 = vmatprep.subr.mxu0 0.0
          %467 = vmatpush1.msra.mxu0 0.0
          %468 = vmatprep.subr.mxu0 0.0
          %469 = vmatpush1.msra.mxu0 0.0
          %470 = vmatprep.subr.mxu0 0.0
          %471 = vmatpush1.msra.mxu0 0.0
          %472 = vmatprep.subr.mxu0 0.0
          %473 = vmatpush1.msra.mxu0 0.0
          %474 = vmatprep.subr.mxu0 0.0
          %475 = vmatpush1.msra.mxu0 0.0
          %476 = vmatprep.subr.mxu0 0.0
          %477 = vmatpush1.msra.mxu0 0.0
          %478 = vmatprep.subr.mxu0 0.0
          %479 = vmatpush1.msra.mxu0 0.0
          %480 = vmatprep.subr.mxu0 0.0
          %481 = vmatpush1.msra.mxu0 0.0
          %482 = vmatprep.subr.mxu0 0.0
          %483 = vmatpush1.msra.mxu0 0.0
          %484 = vmatprep.subr.mxu0 0.0
          %485 = vmatpush1.msra.mxu0 0.0
          %486 = vmatprep.subr.mxu0 0.0
          %487 = vmatpush1.msra.mxu0 0.0
          %488 = vmatprep.subr.mxu0 0.0
          %489 = vmatpush1.msra.mxu0 0.0
          %490 = vmatprep.subr.mxu0 0.0
          %491 = vmatpush1.msra.mxu0 0.0
          %492 = vmatprep.subr.mxu0 0.0
          %493 = vmatpush1.msra.mxu0 0.0
          %494 = vmatprep.subr.mxu0 0.0
          %495 = vmatpush1.msra.mxu0 0.0
          %496 = vmatprep.subr.mxu0 0.0
          %497 = vmatpush1.msra.mxu0 0.0
          %498 = vmatprep.subr.mxu0 0.0
          %499 = vmatpush1.msra.mxu0 0.0
          %500 = vmatprep.subr.mxu0 0.0
          %501 = vmatpush1.msra.mxu0 0.0
          %502 = vmatprep.subr.mxu0 0.0
          %503 = vmatpush1.msra.mxu0 0.0
          %504 = vmatprep.subr.mxu0 0.0
          %505 = vmatpush1.msra.mxu0 0.0
          %506 = vmatprep.subr.mxu0 0.0
          %507 = vmatpush1.msra.mxu0 0.0
          %508 = vmatprep.subr.mxu0 0.0
          %509 = vmatpush1.msra.mxu0 0.0
          %510 = vmatprep.subr.mxu0 0.0
          %511 = vmatpush1.msra.mxu0 0.0
          %512 = vmatprep.subr.mxu0 0.0
          %513 = vmatpush1.msra.mxu0 0.0
          %514 = vmatprep.subr.mxu0 0.0
          %515 = vmatpush1.msra.mxu0 0.0
          %516 = vmatprep.subr.mxu0 0.0
          %517 = vmatpush1.msra.mxu0 0.0
          %518 = vmatprep.subr.mxu0 0.0
          %519 = vmatpush1.msra.mxu0 0.0
          %520 = vmatprep.subr.mxu0 0.0
          %521 = vmatpush1.msra.mxu0 0.0
          %522 = vmatprep.subr.mxu0 0.0
          %523 = vmatpush1.msra.mxu0 0.0
          %524 = vmatprep.mubr.f32.mxu0 0.0
          %525 = vmatmul.mubr.f32.gmra.mrb[0].mxu0 %v455
          %v526 = vpop.f32.mrb[0].mxu0
          %v527 = vadd.f32 0.0, %v526
          %v528 = vpop.f32.mrb[0].mxu0
          %529 = vmatprep.mubr.f32.mxu0 0.0
          %530 = vmatmul.mubr.f32.gmra.mrb[0].mxu0 %v458
          %v531 = vpop.f32.mrb[0].mxu0
          %v532 = vadd.f32 0.0, %v531
          %v533 = vpop.f32.mrb[0].mxu0
          %534 = vdwg.mxu0
          %v535 = vlaneseq
          %v536 = vshrl.u32 %v535, 7
          %v537 = vsub.s32 0, %v536
          %v538 = vrot.slane %v441, %v537
          %vm539 = vcmp.eq.s32.totalorder %v271, %v538
          %vm540 = vcmp.eq.s32.totalorder %v430, %v538
          %v541 = vsel %vm539, %v527, 0.0
          %v542 = vsel %vm540, %v532, 0.0
          %v543 = vsel %vm421, %v541, 0.0
          %v544 = vsel %vm421, %v542, 0.0
          %v545 = vadd.f32 %v543, %v544
          %v546 = vrot.slane %v545, 4
          %v547 = vadd.f32 %v545, %v546
          %v548 = vrot.slane %v547, 2
          %v549 = vadd.f32 %v547, %v548
          %v550 = vrot.slane %v549, 1
          %v551 = vadd.f32 %v549, %v550
          %v552 = vstv %s432
          %vm553 = vcmp.eq.s32.totalorder %v271, %v552
          %v554 = vsel %vm553, %v551, %v437
        $region57: #{tpu_custom_call.1} parent=35 // loop_footer
          %s436 = sadd.s32 1, %s432
        $region58: #{tpu_custom_call.1} parent=35 // loop_footer_branch
          %431 = sbr.rel target = $region54
        $region59: #{tpu_custom_call.1} parent=35 // loop_exit
          _
        %s555 = scalar_lea.vmem [#allocation2], %s268
        %556 = vst.msk [vmem:[%s555] sm:$0xff] %vm421, %v437
        %p557 = scmp.eq.s32.totalorder %s24, 1
        // Predicated region
        $region60: #{tpu_custom_call.1} parent=35 // pred_check
          %p558 = pneg %p557
        $region61: #{tpu_custom_call.1} parent=35 // pred_check_branch
          %560 = sbr.rel (%p558) target = $region63
        $region62: #{tpu_custom_call.1} parent=35 // pred_region
          %v561 = vld [vmem:[#allocation12] sm:$0xff]
          %v562 = vld [vmem:[#allocation12 + $0x8] sm:$0xff]
          %v563 = vld [vmem:[#allocation2] sm:$0xff]
          %v564 = vld [vmem:[#allocation2 + $0x8] sm:$0xff]
          %v565 = vld [vmem:[#allocation2 + $0x10] sm:$0xff]
          %v566 = vld [vmem:[#allocation2 + $0x18] sm:$0xff]
          %v568 = vsel %vm421, %v563, 0
          %v571 = vsel %vm421, %v564, 0
          %v574 = vsel %vm421, %v565, 0
          %v577 = vsel %vm421, %v566, 0
          %v580 = vsel %vm421, %v561, 0
          %v583 = vsel %vm421, %v562, 0
          %585 = vmatprep.subr.mxu0 0.0
          %v586 = vand.u32 %v580, 4294901760
          %587 = vmatpush1.xpose.msra.mxu0 %v586
          %588 = vmatprep.subr.mxu0 0.0
          %v589 = vand.u32 %v583, 4294901760
          %590 = vmatpush1.xpose.msra.mxu0 %v589
          %591 = vmatprep.subr.mxu0 0.0
          %592 = vmatpush1.xpose.msra.mxu0 0.0
          %593 = vmatprep.subr.mxu0 0.0
          %594 = vmatpush1.xpose.msra.mxu0 0.0
          %595 = vmatprep.subr.mxu0 0.0
          %596 = vmatpush1.xpose.msra.mxu0 0.0
          %597 = vmatprep.subr.mxu0 0.0
          %598 = vmatpush1.xpose.msra.mxu0 0.0
          %599 = vmatprep.subr.mxu0 0.0
          %600 = vmatpush1.xpose.msra.mxu0 0.0
          %601 = vmatprep.subr.mxu0 0.0
          %602 = vmatpush1.xpose.msra.mxu0 0.0
          %603 = vmatprep.subr.mxu0 0.0
          %604 = vmatpush1.xpose.msra.mxu0 0.0
          %605 = vmatprep.subr.mxu0 0.0
          %606 = vmatpush1.xpose.msra.mxu0 0.0
          %607 = vmatprep.subr.mxu0 0.0
          %608 = vmatpush1.xpose.msra.mxu0 0.0
          %609 = vmatprep.subr.mxu0 0.0
          %610 = vmatpush1.xpose.msra.mxu0 0.0
          %611 = vmatprep.subr.mxu0 0.0
          %612 = vmatpush1.xpose.msra.mxu0 0.0
          %613 = vmatprep.subr.mxu0 0.0
          %614 = vmatpush1.xpose.msra.mxu0 0.0
          %615 = vmatprep.subr.mxu0 0.0
          %616 = vmatpush1.xpose.msra.mxu0 0.0
          %617 = vmatprep.subr.mxu0 0.0
          %618 = vmatpush1.xpose.msra.mxu0 0.0
          %619 = vmatprep.subr.mxu0 0.0
          %620 = vmatpush1.xpose.msra.mxu0 0.0
          %621 = vmatprep.subr.mxu0 0.0
          %622 = vmatpush1.xpose.msra.mxu0 0.0
          %623 = vmatprep.subr.mxu0 0.0
          %624 = vmatpush1.xpose.msra.mxu0 0.0
          %625 = vmatprep.subr.mxu0 0.0
          %626 = vmatpush1.xpose.msra.mxu0 0.0
          %627 = vmatprep.subr.mxu0 0.0
          %628 = vmatpush1.xpose.msra.mxu0 0.0
          %629 = vmatprep.subr.mxu0 0.0
          %630 = vmatpush1.xpose.msra.mxu0 0.0
          %631 = vmatprep.subr.mxu0 0.0
          %632 = vmatpush1.xpose.msra.mxu0 0.0
          %633 = vmatprep.subr.mxu0 0.0
          %634 = vmatpush1.xpose.msra.mxu0 0.0
          %635 = vmatprep.subr.mxu0 0.0
          %636 = vmatpush1.xpose.msra.mxu0 0.0
          %637 = vmatprep.subr.mxu0 0.0
          %638 = vmatpush1.xpose.msra.mxu0 0.0
          %639 = vmatprep.subr.mxu0 0.0
          %640 = vmatpush1.xpose.msra.mxu0 0.0
          %641 = vmatprep.subr.mxu0 0.0
          %642 = vmatpush1.xpose.msra.mxu0 0.0
          %643 = vmatprep.subr.mxu0 0.0
          %644 = vmatpush1.xpose.msra.mxu0 0.0
          %645 = vmatprep.subr.mxu0 0.0
          %646 = vmatpush1.xpose.msra.mxu0 0.0
          %647 = vmatprep.subr.mxu0 0.0
          %648 = vmatpush1.xpose.msra.mxu0 0.0
          %649 = vmatprep.subr.mxu0 0.0
          %650 = vmatpush1.xpose.msra.mxu0 0.0
          %651 = vmatprep.mubr.f32.mxu0 0.0
          %v652 = vand.u32 %v568, 4294901760
          %v653 = vsub.f32 %v568, %v652
          %v654 = vand.u32 %v653, 4294901760
          %v655 = vsub.f32 %v653, %v654
          %v656 = vand.u32 %v655, 4294901760
          %657 = vmatmul.mubr.f32.gmra.mrb[0].mxu0 %v656
          %v658 = vpop.f32.mrb[0].mxu0
          %v659 = vadd.f32 0.0, %v658
          %v660 = vpop.f32.mrb[0].mxu0
          %661 = vmatprep.mubr.f32.mxu0 0.0
          %v662 = vand.u32 %v571, 4294901760
          %v663 = vsub.f32 %v571, %v662
          %v664 = vand.u32 %v663, 4294901760
          %v665 = vsub.f32 %v663, %v664
          %v666 = vand.u32 %v665, 4294901760
          %667 = vmatmul.mubr.f32.gmra.mrb[0].mxu0 %v666
          %v668 = vpop.f32.mrb[0].mxu0
          %v669 = vadd.f32 0.0, %v668
          %v670 = vpop.f32.mrb[0].mxu0
          %671 = vmatprep.mubr.f32.mxu0 0.0
          %v672 = vand.u32 %v574, 4294901760
          %v673 = vsub.f32 %v574, %v672
          %v674 = vand.u32 %v673, 4294901760
          %v675 = vsub.f32 %v673, %v674
          %v676 = vand.u32 %v675, 4294901760
          %677 = vmatmul.mubr.f32.gmra.mrb[0].mxu0 %v676
          %v678 = vpop.f32.mrb[0].mxu0
          %v679 = vadd.f32 0.0, %v678
          %v680 = vpop.f32.mrb[0].mxu0
          %681 = vmatprep.mubr.f32.mxu0 0.0
          %v682 = vand.u32 %v577, 4294901760
          %v683 = vsub.f32 %v577, %v682
          %v684 = vand.u32 %v683, 4294901760
          %v685 = vsub.f32 %v683, %v684
          %v686 = vand.u32 %v685, 4294901760
          %687 = vmatmul.mubr.f32.gmra.mrb[0].mxu0 %v686
          %v688 = vpop.f32.mrb[0].mxu0
          %v689 = vadd.f32 0.0, %v688
          %v690 = vpop.f32.mrb[0].mxu0
          %691 = vdwg.mxu0
          %692 = vmatprep.subr.mxu0 0.0
          %v693 = vand.u32 %v580, 4294901760
          %v694 = vsub.f32 %v580, %v693
          %v695 = vand.u32 %v694, 4294901760
          %v696 = vsub.f32 %v694, %v695
          %v697 = vand.u32 %v696, 4294901760
          %698 = vmatpush1.xpose.msra.mxu0 %v697
          %699 = vmatprep.subr.mxu0 0.0
          %v700 = vand.u32 %v583, 4294901760
          %v701 = vsub.f32 %v583, %v700
          %v702 = vand.u32 %v701, 4294901760
          %v703 = vsub.f32 %v701, %v702
          %v704 = vand.u32 %v703, 4294901760
          %705 = vmatpush1.xpose.msra.mxu0 %v704
          %706 = vmatprep.subr.mxu0 0.0
          %707 = vmatpush1.xpose.msra.mxu0 0.0
          %708 = vmatprep.subr.mxu0 0.0
          %709 = vmatpush1.xpose.msra.mxu0 0.0
          %710 = vmatprep.subr.mxu0 0.0
          %711 = vmatpush1.xpose.msra.mxu0 0.0
          %712 = vmatprep.subr.mxu0 0.0
          %713 = vmatpush1.xpose.msra.mxu0 0.0
          %714 = vmatprep.subr.mxu0 0.0
          %715 = vmatpush1.xpose.msra.mxu0 0.0
          %716 = vmatprep.subr.mxu0 0.0
          %717 = vmatpush1.xpose.msra.mxu0 0.0
          %718 = vmatprep.subr.mxu0 0.0
          %719 = vmatpush1.xpose.msra.mxu0 0.0
          %720 = vmatprep.subr.mxu0 0.0
          %721 = vmatpush1.xpose.msra.mxu0 0.0
          %722 = vmatprep.subr.mxu0 0.0
          %723 = vmatpush1.xpose.msra.mxu0 0.0
          %724 = vmatprep.subr.mxu0 0.0
          %725 = vmatpush1.xpose.msra.mxu0 0.0
          %726 = vmatprep.subr.mxu0 0.0
          %727 = vmatpush1.xpose.msra.mxu0 0.0
          %728 = vmatprep.subr.mxu0 0.0
          %729 = vmatpush1.xpose.msra.mxu0 0.0
          %730 = vmatprep.subr.mxu0 0.0
          %731 = vmatpush1.xpose.msra.mxu0 0.0
          %732 = vmatprep.subr.mxu0 0.0
          %733 = vmatpush1.xpose.msra.mxu0 0.0
          %734 = vmatprep.subr.mxu0 0.0
          %735 = vmatpush1.xpose.msra.mxu0 0.0
          %736 = vmatprep.subr.mxu0 0.0
          %737 = vmatpush1.xpose.msra.mxu0 0.0
          %738 = vmatprep.subr.mxu0 0.0
          %739 = vmatpush1.xpose.msra.mxu0 0.0
          %740 = vmatprep.subr.mxu0 0.0
          %741 = vmatpush1.xpose.msra.mxu0 0.0
          %742 = vmatprep.subr.mxu0 0.0
          %743 = vmatpush1.xpose.msra.mxu0 0.0
          %744 = vmatprep.subr.mxu0 0.0
          %745 = vmatpush1.xpose.msra.mxu0 0.0
          %746 = vmatprep.subr.mxu0 0.0
          %747 = vmatpush1.xpose.msra.mxu0 0.0
          %748 = vmatprep.subr.mxu0 0.0
          %749 = vmatpush1.xpose.msra.mxu0 0.0
          %750 = vmatprep.subr.mxu0 0.0
          %751 = vmatpush1.xpose.msra.mxu0 0.0
          %752 = vmatprep.subr.mxu0 0.0
          %753 = vmatpush1.xpose.msra.mxu0 0.0
          %754 = vmatprep.subr.mxu0 0.0
          %755 = vmatpush1.xpose.msra.mxu0 0.0
          %756 = vmatprep.subr.mxu0 0.0
          %757 = vmatpush1.xpose.msra.mxu0 0.0
          %758 = vmatprep.subr.mxu0 0.0
          %759 = vmatpush1.xpose.msra.mxu0 0.0
          %760 = vmatprep.subr.mxu0 0.0
          %761 = vmatpush1.xpose.msra.mxu0 0.0
          %762 = vmatprep.subr.mxu0 0.0
          %763 = vmatpush1.xpose.msra.mxu0 0.0
          %764 = vmatprep.subr.mxu0 0.0
          %765 = vmatpush1.xpose.msra.mxu0 0.0
          %766 = vmatprep.mubr.f32.mxu0 0.0
          %v767 = vand.u32 %v568, 4294901760
          %768 = vmatmul.mubr.f32.gmra.mrb[0].mxu0 %v767
          %v769 = vpop.f32.mrb[0].mxu0
          %v770 = vadd.f32 %v659, %v769
          %v771 = vpop.f32.mrb[0].mxu0
          %772 = vmatprep.mubr.f32.mxu0 0.0
          %v773 = vand.u32 %v571, 4294901760
          %774 = vmatmul.mubr.f32.gmra.mrb[0].mxu0 %v773
          %v775 = vpop.f32.mrb[0].mxu0
          %v776 = vadd.f32 %v669, %v775
          %v777 = vpop.f32.mrb[0].mxu0
          %778 = vmatprep.mubr.f32.mxu0 0.0
          %v779 = vand.u32 %v574, 4294901760
          %780 = vmatmul.mubr.f32.gmra.mrb[0].mxu0 %v779
          %v781 = vpop.f32.mrb[0].mxu0
          %v782 = vadd.f32 %v679, %v781
          %v783 = vpop.f32.mrb[0].mxu0
          %784 = vmatprep.mubr.f32.mxu0 0.0
          %v785 = vand.u32 %v577, 4294901760
          %786 = vmatmul.mubr.f32.gmra.mrb[0].mxu0 %v785
          %v787 = vpop.f32.mrb[0].mxu0
          %v788 = vadd.f32 %v689, %v787
          %v789 = vpop.f32.mrb[0].mxu0
          %790 = vdwg.mxu0
          %791 = vmatprep.subr.mxu0 0.0
          %v792 = vand.u32 %v580, 4294901760
          %v793 = vsub.f32 %v580, %v792
          %794 = vmatpush1.xpose.msra.mxu0 %v793
          %795 = vmatprep.subr.mxu0 0.0
          %v796 = vand.u32 %v583, 4294901760
          %v797 = vsub.f32 %v583, %v796
          %798 = vmatpush1.xpose.msra.mxu0 %v797
          %799 = vmatprep.subr.mxu0 0.0
          %800 = vmatpush1.xpose.msra.mxu0 0.0
          %801 = vmatprep.subr.mxu0 0.0
          %802 = vmatpush1.xpose.msra.mxu0 0.0
          %803 = vmatprep.subr.mxu0 0.0
          %804 = vmatpush1.xpose.msra.mxu0 0.0
          %805 = vmatprep.subr.mxu0 0.0
          %806 = vmatpush1.xpose.msra.mxu0 0.0
          %807 = vmatprep.subr.mxu0 0.0
          %808 = vmatpush1.xpose.msra.mxu0 0.0
          %809 = vmatprep.subr.mxu0 0.0
          %810 = vmatpush1.xpose.msra.mxu0 0.0
          %811 = vmatprep.subr.mxu0 0.0
          %812 = vmatpush1.xpose.msra.mxu0 0.0
          %813 = vmatprep.subr.mxu0 0.0
          %814 = vmatpush1.xpose.msra.mxu0 0.0
          %815 = vmatprep.subr.mxu0 0.0
          %816 = vmatpush1.xpose.msra.mxu0 0.0
          %817 = vmatprep.subr.mxu0 0.0
          %818 = vmatpush1.xpose.msra.mxu0 0.0
          %819 = vmatprep.subr.mxu0 0.0
          %820 = vmatpush1.xpose.msra.mxu0 0.0
          %821 = vmatprep.subr.mxu0 0.0
          %822 = vmatpush1.xpose.msra.mxu0 0.0
          %823 = vmatprep.subr.mxu0 0.0
          %824 = vmatpush1.xpose.msra.mxu0 0.0
          %825 = vmatprep.subr.mxu0 0.0
          %826 = vmatpush1.xpose.msra.mxu0 0.0
          %827 = vmatprep.subr.mxu0 0.0
          %828 = vmatpush1.xpose.msra.mxu0 0.0
          %829 = vmatprep.subr.mxu0 0.0
          %830 = vmatpush1.xpose.msra.mxu0 0.0
          %831 = vmatprep.subr.mxu0 0.0
          %832 = vmatpush1.xpose.msra.mxu0 0.0
          %833 = vmatprep.subr.mxu0 0.0
          %834 = vmatpush1.xpose.msra.mxu0 0.0
          %835 = vmatprep.subr.mxu0 0.0
          %836 = vmatpush1.xpose.msra.mxu0 0.0
          %837 = vmatprep.subr.mxu0 0.0
          %838 = vmatpush1.xpose.msra.mxu0 0.0
          %839 = vmatprep.subr.mxu0 0.0
          %840 = vmatpush1.xpose.msra.mxu0 0.0
          %841 = vmatprep.subr.mxu0 0.0
          %842 = vmatpush1.xpose.msra.mxu0 0.0
          %843 = vmatprep.subr.mxu0 0.0
          %844 = vmatpush1.xpose.msra.mxu0 0.0
          %845 = vmatprep.subr.mxu0 0.0
          %846 = vmatpush1.xpose.msra.mxu0 0.0
          %847 = vmatprep.subr.mxu0 0.0
          %848 = vmatpush1.xpose.msra.mxu0 0.0
          %849 = vmatprep.subr.mxu0 0.0
          %850 = vmatpush1.xpose.msra.mxu0 0.0
          %851 = vmatprep.subr.mxu0 0.0
          %852 = vmatpush1.xpose.msra.mxu0 0.0
          %853 = vmatprep.subr.mxu0 0.0
          %854 = vmatpush1.xpose.msra.mxu0 0.0
          %855 = vmatprep.subr.mxu0 0.0
          %856 = vmatpush1.xpose.msra.mxu0 0.0
          %857 = vmatprep.subr.mxu0 0.0
          %858 = vmatpush1.xpose.msra.mxu0 0.0
          %859 = vmatprep.mubr.f32.mxu0 0.0
          %v860 = vand.u32 %v568, 4294901760
          %v861 = vsub.f32 %v568, %v860
          %862 = vmatmul.mubr.f32.gmra.mrb[0].mxu0 %v861
          %v863 = vpop.f32.mrb[0].mxu0
          %v864 = vadd.f32 %v770, %v863
          %v865 = vpop.f32.mrb[0].mxu0
          %866 = vmatprep.mubr.f32.mxu0 0.0
          %v867 = vand.u32 %v571, 4294901760
          %v868 = vsub.f32 %v571, %v867
          %869 = vmatmul.mubr.f32.gmra.mrb[0].mxu0 %v868
          %v870 = vpop.f32.mrb[0].mxu0
          %v871 = vadd.f32 %v776, %v870
          %v872 = vpop.f32.mrb[0].mxu0
          %873 = vmatprep.mubr.f32.mxu0 0.0
          %v874 = vand.u32 %v574, 4294901760
          %v875 = vsub.f32 %v574, %v874
          %876 = vmatmul.mubr.f32.gmra.mrb[0].mxu0 %v875
          %v877 = vpop.f32.mrb[0].mxu0
          %v878 = vadd.f32 %v782, %v877
          %v879 = vpop.f32.mrb[0].mxu0
          %880 = vmatprep.mubr.f32.mxu0 0.0
          %v881 = vand.u32 %v577, 4294901760
          %v882 = vsub.f32 %v577, %v881
          %883 = vmatmul.mubr.f32.gmra.mrb[0].mxu0 %v882
          %v884 = vpop.f32.mrb[0].mxu0
          %v885 = vadd.f32 %v788, %v884
          %v886 = vpop.f32.mrb[0].mxu0
          %887 = vdwg.mxu0
          %888 = vmatprep.subr.mxu0 0.0
          %v889 = vand.u32 %v580, 4294901760
          %890 = vmatpush1.xpose.msra.mxu0 %v889
          %891 = vmatprep.subr.mxu0 0.0
          %v892 = vand.u32 %v583, 4294901760
          %893 = vmatpush1.xpose.msra.mxu0 %v892
          %894 = vmatprep.subr.mxu0 0.0
          %895 = vmatpush1.xpose.msra.mxu0 0.0
          %896 = vmatprep.subr.mxu0 0.0
          %897 = vmatpush1.xpose.msra.mxu0 0.0
          %898 = vmatprep.subr.mxu0 0.0
          %899 = vmatpush1.xpose.msra.mxu0 0.0
          %900 = vmatprep.subr.mxu0 0.0
          %901 = vmatpush1.xpose.msra.mxu0 0.0
          %902 = vmatprep.subr.mxu0 0.0
          %903 = vmatpush1.xpose.msra.mxu0 0.0
          %904 = vmatprep.subr.mxu0 0.0
          %905 = vmatpush1.xpose.msra.mxu0 0.0
          %906 = vmatprep.subr.mxu0 0.0
          %907 = vmatpush1.xpose.msra.mxu0 0.0
          %908 = vmatprep.subr.mxu0 0.0
          %909 = vmatpush1.xpose.msra.mxu0 0.0
          %910 = vmatprep.subr.mxu0 0.0
          %911 = vmatpush1.xpose.msra.mxu0 0.0
          %912 = vmatprep.subr.mxu0 0.0
          %913 = vmatpush1.xpose.msra.mxu0 0.0
          %914 = vmatprep.subr.mxu0 0.0
          %915 = vmatpush1.xpose.msra.mxu0 0.0
          %916 = vmatprep.subr.mxu0 0.0
          %917 = vmatpush1.xpose.msra.mxu0 0.0
          %918 = vmatprep.subr.mxu0 0.0
          %919 = vmatpush1.xpose.msra.mxu0 0.0
          %920 = vmatprep.subr.mxu0 0.0
          %921 = vmatpush1.xpose.msra.mxu0 0.0
          %922 = vmatprep.subr.mxu0 0.0
          %923 = vmatpush1.xpose.msra.mxu0 0.0
          %924 = vmatprep.subr.mxu0 0.0
          %925 = vmatpush1.xpose.msra.mxu0 0.0
          %926 = vmatprep.subr.mxu0 0.0
          %927 = vmatpush1.xpose.msra.mxu0 0.0
          %928 = vmatprep.subr.mxu0 0.0
          %929 = vmatpush1.xpose.msra.mxu0 0.0
          %930 = vmatprep.subr.mxu0 0.0
          %931 = vmatpush1.xpose.msra.mxu0 0.0
          %932 = vmatprep.subr.mxu0 0.0
          %933 = vmatpush1.xpose.msra.mxu0 0.0
          %934 = vmatprep.subr.mxu0 0.0
          %935 = vmatpush1.xpose.msra.mxu0 0.0
          %936 = vmatprep.subr.mxu0 0.0
          %937 = vmatpush1.xpose.msra.mxu0 0.0
          %938 = vmatprep.subr.mxu0 0.0
          %939 = vmatpush1.xpose.msra.mxu0 0.0
          %940 = vmatprep.subr.mxu0 0.0
          %941 = vmatpush1.xpose.msra.mxu0 0.0
          %942 = vmatprep.subr.mxu0 0.0
          %943 = vmatpush1.xpose.msra.mxu0 0.0
          %944 = vmatprep.subr.mxu0 0.0
          %945 = vmatpush1.xpose.msra.mxu0 0.0
          %946 = vmatprep.subr.mxu0 0.0
          %947 = vmatpush1.xpose.msra.mxu0 0.0
          %948 = vmatprep.subr.mxu0 0.0
          %949 = vmatpush1.xpose.msra.mxu0 0.0
          %950 = vmatprep.subr.mxu0 0.0
          %951 = vmatpush1.xpose.msra.mxu0 0.0
          %952 = vmatprep.subr.mxu0 0.0
          %953 = vmatpush1.xpose.msra.mxu0 0.0
          %954 = vmatprep.mubr.f32.mxu0 0.0
          %v955 = vand.u32 %v568, 4294901760
          %v956 = vsub.f32 %v568, %v955
          %v957 = vand.u32 %v956, 4294901760
          %958 = vmatmul.mubr.f32.gmra.mrb[0].mxu0 %v957
          %v959 = vpop.f32.mrb[0].mxu0
          %v960 = vadd.f32 %v864, %v959
          %v961 = vpop.f32.mrb[0].mxu0
          %962 = vmatprep.mubr.f32.mxu0 0.0
          %v963 = vand.u32 %v571, 4294901760
          %v964 = vsub.f32 %v571, %v963
          %v965 = vand.u32 %v964, 4294901760
          %966 = vmatmul.mubr.f32.gmra.mrb[0].mxu0 %v965
          %v967 = vpop.f32.mrb[0].mxu0
          %v968 = vadd.f32 %v871, %v967
          %v969 = vpop.f32.mrb[0].mxu0
          %970 = vmatprep.mubr.f32.mxu0 0.0
          %v971 = vand.u32 %v574, 4294901760
          %v972 = vsub.f32 %v574, %v971
          %v973 = vand.u32 %v972, 4294901760
          %974 = vmatmul.mubr.f32.gmra.mrb[0].mxu0 %v973
          %v975 = vpop.f32.mrb[0].mxu0
          %v976 = vadd.f32 %v878, %v975
          %v977 = vpop.f32.mrb[0].mxu0
          %978 = vmatprep.mubr.f32.mxu0 0.0
          %v979 = vand.u32 %v577, 4294901760
          %v980 = vsub.f32 %v577, %v979
          %v981 = vand.u32 %v980, 4294901760
          %982 = vmatmul.mubr.f32.gmra.mrb[0].mxu0 %v981
          %v983 = vpop.f32.mrb[0].mxu0
          %v984 = vadd.f32 %v885, %v983
          %v985 = vpop.f32.mrb[0].mxu0
          %986 = vdwg.mxu0
          %987 = vmatprep.subr.mxu0 0.0
          %v988 = vand.u32 %v580, 4294901760
          %v989 = vsub.f32 %v580, %v988
          %v990 = vand.u32 %v989, 4294901760
          %991 = vmatpush1.xpose.msra.mxu0 %v990
          %992 = vmatprep.subr.mxu0 0.0
          %v993 = vand.u32 %v583, 4294901760
          %v994 = vsub.f32 %v583, %v993
          %v995 = vand.u32 %v994, 4294901760
          %996 = vmatpush1.xpose.msra.mxu0 %v995
          %997 = vmatprep.subr.mxu0 0.0
          %998 = vmatpush1.xpose.msra.mxu0 0.0
          %999 = vmatprep.subr.mxu0 0.0
          %1000 = vmatpush1.xpose.msra.mxu0 0.0
          %1001 = vmatprep.subr.mxu0 0.0
          %1002 = vmatpush1.xpose.msra.mxu0 0.0
          %1003 = vmatprep.subr.mxu0 0.0
          %1004 = vmatpush1.xpose.msra.mxu0 0.0
          %1005 = vmatprep.subr.mxu0 0.0
          %1006 = vmatpush1.xpose.msra.mxu0 0.0
          %1007 = vmatprep.subr.mxu0 0.0
          %1008 = vmatpush1.xpose.msra.mxu0 0.0
          %1009 = vmatprep.subr.mxu0 0.0
          %1010 = vmatpush1.xpose.msra.mxu0 0.0
          %1011 = vmatprep.subr.mxu0 0.0
          %1012 = vmatpush1.xpose.msra.mxu0 0.0
          %1013 = vmatprep.subr.mxu0 0.0
          %1014 = vmatpush1.xpose.msra.mxu0 0.0
          %1015 = vmatprep.subr.mxu0 0.0
          %1016 = vmatpush1.xpose.msra.mxu0 0.0
          %1017 = vmatprep.subr.mxu0 0.0
          %1018 = vmatpush1.xpose.msra.mxu0 0.0
          %1019 = vmatprep.subr.mxu0 0.0
          %1020 = vmatpush1.xpose.msra.mxu0 0.0
          %1021 = vmatprep.subr.mxu0 0.0
          %1022 = vmatpush1.xpose.msra.mxu0 0.0
          %1023 = vmatprep.subr.mxu0 0.0
          %1024 = vmatpush1.xpose.msra.mxu0 0.0
          %1025 = vmatprep.subr.mxu0 0.0
          %1026 = vmatpush1.xpose.msra.mxu0 0.0
          %1027 = vmatprep.subr.mxu0 0.0
          %1028 = vmatpush1.xpose.msra.mxu0 0.0
          %1029 = vmatprep.subr.mxu0 0.0
          %1030 = vmatpush1.xpose.msra.mxu0 0.0
          %1031 = vmatprep.subr.mxu0 0.0
          %1032 = vmatpush1.xpose.msra.mxu0 0.0
          %1033 = vmatprep.subr.mxu0 0.0
          %1034 = vmatpush1.xpose.msra.mxu0 0.0
          %1035 = vmatprep.subr.mxu0 0.0
          %1036 = vmatpush1.xpose.msra.mxu0 0.0
          %1037 = vmatprep.subr.mxu0 0.0
          %1038 = vmatpush1.xpose.msra.mxu0 0.0
          %1039 = vmatprep.subr.mxu0 0.0
          %1040 = vmatpush1.xpose.msra.mxu0 0.0
          %1041 = vmatprep.subr.mxu0 0.0
          %1042 = vmatpush1.xpose.msra.mxu0 0.0
          %1043 = vmatprep.subr.mxu0 0.0
          %1044 = vmatpush1.xpose.msra.mxu0 0.0
          %1045 = vmatprep.subr.mxu0 0.0
          %1046 = vmatpush1.xpose.msra.mxu0 0.0
          %1047 = vmatprep.subr.mxu0 0.0
          %1048 = vmatpush1.xpose.msra.mxu0 0.0
          %1049 = vmatprep.subr.mxu0 0.0
          %1050 = vmatpush1.xpose.msra.mxu0 0.0
          %1051 = vmatprep.subr.mxu0 0.0
          %1052 = vmatpush1.xpose.msra.mxu0 0.0
          %1053 = vmatprep.subr.mxu0 0.0
          %1054 = vmatpush1.xpose.msra.mxu0 0.0
          %1055 = vmatprep.subr.mxu0 0.0
          %1056 = vmatpush1.xpose.msra.mxu0 0.0
          %1057 = vmatprep.mubr.f32.mxu0 0.0
          %v1058 = vand.u32 %v568, 4294901760
          %1059 = vmatmul.mubr.f32.gmra.mrb[0].mxu0 %v1058
          %v1060 = vpop.f32.mrb[0].mxu0
          %v1061 = vadd.f32 %v960, %v1060
          %v1062 = vpop.f32.mrb[0].mxu0
          %1063 = vmatprep.mubr.f32.mxu0 0.0
          %v1064 = vand.u32 %v571, 4294901760
          %1065 = vmatmul.mubr.f32.gmra.mrb[0].mxu0 %v1064
          %v1066 = vpop.f32.mrb[0].mxu0
          %v1067 = vadd.f32 %v968, %v1066
          %v1068 = vpop.f32.mrb[0].mxu0
          %1069 = vmatprep.mubr.f32.mxu0 0.0
          %v1070 = vand.u32 %v574, 4294901760
          %1071 = vmatmul.mubr.f32.gmra.mrb[0].mxu0 %v1070
          %v1072 = vpop.f32.mrb[0].mxu0
          %v1073 = vadd.f32 %v976, %v1072
          %v1074 = vpop.f32.mrb[0].mxu0
          %1075 = vmatprep.mubr.f32.mxu0 0.0
          %v1076 = vand.u32 %v577, 4294901760
          %1077 = vmatmul.mubr.f32.gmra.mrb[0].mxu0 %v1076
          %v1078 = vpop.f32.mrb[0].mxu0
          %v1079 = vadd.f32 %v984, %v1078
          %v1080 = vpop.f32.mrb[0].mxu0
          %1081 = vdwg.mxu0
          %1082 = vmatprep.subr.mxu0 0.0
          %v1083 = vand.u32 %v580, 4294901760
          %1084 = vmatpush1.xpose.msra.mxu0 %v1083
          %1085 = vmatprep.subr.mxu0 0.0
          %v1086 = vand.u32 %v583, 4294901760
          %1087 = vmatpush1.xpose.msra.mxu0 %v1086
          %1088 = vmatprep.subr.mxu0 0.0
          %1089 = vmatpush1.xpose.msra.mxu0 0.0
          %1090 = vmatprep.subr.mxu0 0.0
          %1091 = vmatpush1.xpose.msra.mxu0 0.0
          %1092 = vmatprep.subr.mxu0 0.0
          %1093 = vmatpush1.xpose.msra.mxu0 0.0
          %1094 = vmatprep.subr.mxu0 0.0
          %1095 = vmatpush1.xpose.msra.mxu0 0.0
          %1096 = vmatprep.subr.mxu0 0.0
          %1097 = vmatpush1.xpose.msra.mxu0 0.0
          %1098 = vmatprep.subr.mxu0 0.0
          %1099 = vmatpush1.xpose.msra.mxu0 0.0
          %1100 = vmatprep.subr.mxu0 0.0
          %1101 = vmatpush1.xpose.msra.mxu0 0.0
          %1102 = vmatprep.subr.mxu0 0.0
          %1103 = vmatpush1.xpose.msra.mxu0 0.0
          %1104 = vmatprep.subr.mxu0 0.0
          %1105 = vmatpush1.xpose.msra.mxu0 0.0
          %1106 = vmatprep.subr.mxu0 0.0
          %1107 = vmatpush1.xpose.msra.mxu0 0.0
          %1108 = vmatprep.subr.mxu0 0.0
          %1109 = vmatpush1.xpose.msra.mxu0 0.0
          %1110 = vmatprep.subr.mxu0 0.0
          %1111 = vmatpush1.xpose.msra.mxu0 0.0
          %1112 = vmatprep.subr.mxu0 0.0
          %1113 = vmatpush1.xpose.msra.mxu0 0.0
          %1114 = vmatprep.subr.mxu0 0.0
          %1115 = vmatpush1.xpose.msra.mxu0 0.0
          %1116 = vmatprep.subr.mxu0 0.0
          %1117 = vmatpush1.xpose.msra.mxu0 0.0
          %1118 = vmatprep.subr.mxu0 0.0
          %1119 = vmatpush1.xpose.msra.mxu0 0.0
          %1120 = vmatprep.subr.mxu0 0.0
          %1121 = vmatpush1.xpose.msra.mxu0 0.0
          %1122 = vmatprep.subr.mxu0 0.0
          %1123 = vmatpush1.xpose.msra.mxu0 0.0
          %1124 = vmatprep.subr.mxu0 0.0
          %1125 = vmatpush1.xpose.msra.mxu0 0.0
          %1126 = vmatprep.subr.mxu0 0.0
          %1127 = vmatpush1.xpose.msra.mxu0 0.0
          %1128 = vmatprep.subr.mxu0 0.0
          %1129 = vmatpush1.xpose.msra.mxu0 0.0
          %1130 = vmatprep.subr.mxu0 0.0
          %1131 = vmatpush1.xpose.msra.mxu0 0.0
          %1132 = vmatprep.subr.mxu0 0.0
          %1133 = vmatpush1.xpose.msra.mxu0 0.0
          %1134 = vmatprep.subr.mxu0 0.0
          %1135 = vmatpush1.xpose.msra.mxu0 0.0
          %1136 = vmatprep.subr.mxu0 0.0
          %1137 = vmatpush1.xpose.msra.mxu0 0.0
          %1138 = vmatprep.subr.mxu0 0.0
          %1139 = vmatpush1.xpose.msra.mxu0 0.0
          %1140 = vmatprep.subr.mxu0 0.0
          %1141 = vmatpush1.xpose.msra.mxu0 0.0
          %1142 = vmatprep.subr.mxu0 0.0
          %1143 = vmatpush1.xpose.msra.mxu0 0.0
          %1144 = vmatprep.subr.mxu0 0.0
          %1145 = vmatpush1.xpose.msra.mxu0 0.0
          %1146 = vmatprep.subr.mxu0 0.0
          %1147 = vmatpush1.xpose.msra.mxu0 0.0
          %1148 = vmatprep.mubr.f32.mxu0 0.0
          %v1149 = vand.u32 %v568, 4294901760
          %1150 = vmatmul.mubr.f32.gmra.mrb[0].mxu0 %v1149
          %v1151 = vpop.f32.mrb[0].mxu0
          %v1152 = vadd.f32 %v1061, %v1151
          %v1153 = vpop.f32.mrb[0].mxu0
          %1154 = vmatprep.mubr.f32.mxu0 0.0
          %v1155 = vand.u32 %v571, 4294901760
          %1156 = vmatmul.mubr.f32.gmra.mrb[0].mxu0 %v1155
          %v1157 = vpop.f32.mrb[0].mxu0
          %v1158 = vadd.f32 %v1067, %v1157
          %v1159 = vpop.f32.mrb[0].mxu0
          %1160 = vmatprep.mubr.f32.mxu0 0.0
          %v1161 = vand.u32 %v574, 4294901760
          %1162 = vmatmul.mubr.f32.gmra.mrb[0].mxu0 %v1161
          %v1163 = vpop.f32.mrb[0].mxu0
          %v1164 = vadd.f32 %v1073, %v1163
          %v1165 = vpop.f32.mrb[0].mxu0
          %1166 = vmatprep.mubr.f32.mxu0 0.0
          %v1167 = vand.u32 %v577, 4294901760
          %1168 = vmatmul.mubr.f32.gmra.mrb[0].mxu0 %v1167
          %v1169 = vpop.f32.mrb[0].mxu0
          %v1170 = vadd.f32 %v1079, %v1169
          %v1171 = vpop.f32.mrb[0].mxu0
          %1172 = vdwg.mxu0
          %1173 = vmatprep.subr.mxu0 0.0
          %v1174 = vand.u32 %v1152, 4294901760
          %1175 = vmatpush1.msra.mxu0 %v1174
          %1176 = vmatprep.subr.mxu0 0.0
          %v1177 = vand.u32 %v1158, 4294901760
          %1178 = vmatpush1.msra.mxu0 %v1177
          %1179 = vmatprep.subr.mxu0 0.0
          %1180 = vmatpush1.msra.mxu0 0.0
          %1181 = vmatprep.subr.mxu0 0.0
          %1182 = vmatpush1.msra.mxu0 0.0
          %1183 = vmatprep.subr.mxu0 0.0
          %1184 = vmatpush1.msra.mxu0 0.0
          %1185 = vmatprep.subr.mxu0 0.0
          %1186 = vmatpush1.msra.mxu0 0.0
          %1187 = vmatprep.subr.mxu0 0.0
          %1188 = vmatpush1.msra.mxu0 0.0
          %1189 = vmatprep.subr.mxu0 0.0
          %1190 = vmatpush1.msra.mxu0 0.0
          %1191 = vmatprep.subr.mxu0 0.0
          %1192 = vmatpush1.msra.mxu0 0.0
          %1193 = vmatprep.subr.mxu0 0.0
          %1194 = vmatpush1.msra.mxu0 0.0
          %1195 = vmatprep.subr.mxu0 0.0
          %1196 = vmatpush1.msra.mxu0 0.0
          %1197 = vmatprep.subr.mxu0 0.0
          %1198 = vmatpush1.msra.mxu0 0.0
          %1199 = vmatprep.subr.mxu0 0.0
          %1200 = vmatpush1.msra.mxu0 0.0
          %1201 = vmatprep.subr.mxu0 0.0
          %1202 = vmatpush1.msra.mxu0 0.0
          %1203 = vmatprep.subr.mxu0 0.0
          %1204 = vmatpush1.msra.mxu0 0.0
          %1205 = vmatprep.subr.mxu0 0.0
          %1206 = vmatpush1.msra.mxu0 0.0
          %1207 = vmatprep.subr.mxu0 0.0
          %1208 = vmatpush1.msra.mxu0 0.0
          %1209 = vmatprep.subr.mxu0 0.0
          %1210 = vmatpush1.msra.mxu0 0.0
          %1211 = vmatprep.subr.mxu0 0.0
          %1212 = vmatpush1.msra.mxu0 0.0
          %1213 = vmatprep.subr.mxu0 0.0
          %1214 = vmatpush1.msra.mxu0 0.0
          %1215 = vmatprep.subr.mxu0 0.0
          %1216 = vmatpush1.msra.mxu0 0.0
          %1217 = vmatprep.subr.mxu0 0.0
          %1218 = vmatpush1.msra.mxu0 0.0
          %1219 = vmatprep.subr.mxu0 0.0
          %1220 = vmatpush1.msra.mxu0 0.0
          %1221 = vmatprep.subr.mxu0 0.0
          %1222 = vmatpush1.msra.mxu0 0.0
          %1223 = vmatprep.subr.mxu0 0.0
          %1224 = vmatpush1.msra.mxu0 0.0
          %1225 = vmatprep.subr.mxu0 0.0
          %1226 = vmatpush1.msra.mxu0 0.0
          %1227 = vmatprep.subr.mxu0 0.0
          %1228 = vmatpush1.msra.mxu0 0.0
          %1229 = vmatprep.subr.mxu0 0.0
          %1230 = vmatpush1.msra.mxu0 0.0
          %1231 = vmatprep.subr.mxu0 0.0
          %1232 = vmatpush1.msra.mxu0 0.0
          %1233 = vmatprep.subr.mxu0 0.0
          %1234 = vmatpush1.msra.mxu0 0.0
          %1235 = vmatprep.subr.mxu0 0.0
          %1236 = vmatpush1.msra.mxu0 0.0
          %1237 = vmatprep.subr.mxu0 0.0
          %1238 = vmatpush1.msra.mxu0 0.0
          %1239 = vmatprep.mubr.f32.mxu0 0.0
          %v1240 = vand.u32 %v580, 4294901760
          %v1241 = vsub.f32 %v580, %v1240
          %v1242 = vand.u32 %v1241, 4294901760
          %v1243 = vsub.f32 %v1241, %v1242
          %v1244 = vand.u32 %v1243, 4294901760
          %1245 = vmatmul.mubr.f32.gmra.mrb[0].mxu0 %v1244
          %v1246 = vpop.f32.mrb[0].mxu0
          %v1247 = vadd.f32 0.0, %v1246
          %v1248 = vpop.f32.mrb[0].mxu0
          %1249 = vmatprep.mubr.f32.mxu0 0.0
          %v1250 = vand.u32 %v583, 4294901760
          %v1251 = vsub.f32 %v583, %v1250
          %v1252 = vand.u32 %v1251, 4294901760
          %v1253 = vsub.f32 %v1251, %v1252
          %v1254 = vand.u32 %v1253, 4294901760
          %1255 = vmatmul.mubr.f32.gmra.mrb[0].mxu0 %v1254
          %v1256 = vpop.f32.mrb[0].mxu0
          %v1257 = vadd.f32 0.0, %v1256
          %v1258 = vpop.f32.mrb[0].mxu0
          %1259 = vdwg.mxu0
          %1260 = vmatprep.subr.mxu0 0.0
          %v1261 = vand.u32 %v1152, 4294901760
          %v1262 = vsub.f32 %v1152, %v1261
          %v1263 = vand.u32 %v1262, 4294901760
          %v1264 = vsub.f32 %v1262, %v1263
          %v1265 = vand.u32 %v1264, 4294901760
          %1266 = vmatpush1.msra.mxu0 %v1265
          %1267 = vmatprep.subr.mxu0 0.0
          %v1268 = vand.u32 %v1158, 4294901760
          %v1269 = vsub.f32 %v1158, %v1268
          %v1270 = vand.u32 %v1269, 4294901760
          %v1271 = vsub.f32 %v1269, %v1270
          %v1272 = vand.u32 %v1271, 4294901760
          %1273 = vmatpush1.msra.mxu0 %v1272
          %1274 = vmatprep.subr.mxu0 0.0
          %1275 = vmatpush1.msra.mxu0 0.0
          %1276 = vmatprep.subr.mxu0 0.0
          %1277 = vmatpush1.msra.mxu0 0.0
          %1278 = vmatprep.subr.mxu0 0.0
          %1279 = vmatpush1.msra.mxu0 0.0
          %1280 = vmatprep.subr.mxu0 0.0
          %1281 = vmatpush1.msra.mxu0 0.0
          %1282 = vmatprep.subr.mxu0 0.0
          %1283 = vmatpush1.msra.mxu0 0.0
          %1284 = vmatprep.subr.mxu0 0.0
          %1285 = vmatpush1.msra.mxu0 0.0
          %1286 = vmatprep.subr.mxu0 0.0
          %1287 = vmatpush1.msra.mxu0 0.0
          %1288 = vmatprep.subr.mxu0 0.0
          %1289 = vmatpush1.msra.mxu0 0.0
          %1290 = vmatprep.subr.mxu0 0.0
          %1291 = vmatpush1.msra.mxu0 0.0
          %1292 = vmatprep.subr.mxu0 0.0
          %1293 = vmatpush1.msra.mxu0 0.0
          %1294 = vmatprep.subr.mxu0 0.0
          %1295 = vmatpush1.msra.mxu0 0.0
          %1296 = vmatprep.subr.mxu0 0.0
          %1297 = vmatpush1.msra.mxu0 0.0
          %1298 = vmatprep.subr.mxu0 0.0
          %1299 = vmatpush1.msra.mxu0 0.0
          %1300 = vmatprep.subr.mxu0 0.0
          %1301 = vmatpush1.msra.mxu0 0.0
          %1302 = vmatprep.subr.mxu0 0.0
          %1303 = vmatpush1.msra.mxu0 0.0
          %1304 = vmatprep.subr.mxu0 0.0
          %1305 = vmatpush1.msra.mxu0 0.0
          %1306 = vmatprep.subr.mxu0 0.0
          %1307 = vmatpush1.msra.mxu0 0.0
          %1308 = vmatprep.subr.mxu0 0.0
          %1309 = vmatpush1.msra.mxu0 0.0
          %1310 = vmatprep.subr.mxu0 0.0
          %1311 = vmatpush1.msra.mxu0 0.0
          %1312 = vmatprep.subr.mxu0 0.0
          %1313 = vmatpush1.msra.mxu0 0.0
          %1314 = vmatprep.subr.mxu0 0.0
          %1315 = vmatpush1.msra.mxu0 0.0
          %1316 = vmatprep.subr.mxu0 0.0
          %1317 = vmatpush1.msra.mxu0 0.0
          %1318 = vmatprep.subr.mxu0 0.0
          %1319 = vmatpush1.msra.mxu0 0.0
          %1320 = vmatprep.subr.mxu0 0.0
          %1321 = vmatpush1.msra.mxu0 0.0
          %1322 = vmatprep.subr.mxu0 0.0
          %1323 = vmatpush1.msra.mxu0 0.0
          %1324 = vmatprep.subr.mxu0 0.0
          %1325 = vmatpush1.msra.mxu0 0.0
          %1326 = vmatprep.subr.mxu0 0.0
          %1327 = vmatpush1.msra.mxu0 0.0
          %1328 = vmatprep.subr.mxu0 0.0
          %1329 = vmatpush1.msra.mxu0 0.0
          %1330 = vmatprep.subr.mxu0 0.0
          %1331 = vmatpush1.msra.mxu0 0.0
          %1332 = vmatprep.subr.mxu0 0.0
          %1333 = vmatpush1.msra.mxu0 0.0
          %1334 = vmatprep.mubr.f32.mxu0 0.0
          %v1335 = vand.u32 %v580, 4294901760
          %1336 = vmatmul.mubr.f32.gmra.mrb[0].mxu0 %v1335
          %v1337 = vpop.f32.mrb[0].mxu0
          %v1338 = vadd.f32 %v1247, %v1337
          %v1339 = vpop.f32.mrb[0].mxu0
          %1340 = vmatprep.mubr.f32.mxu0 0.0
          %v1341 = vand.u32 %v583, 4294901760
          %1342 = vmatmul.mubr.f32.gmra.mrb[0].mxu0 %v1341
          %v1343 = vpop.f32.mrb[0].mxu0
          %v1344 = vadd.f32 %v1257, %v1343
          %v1345 = vpop.f32.mrb[0].mxu0
          %1346 = vdwg.mxu0
          %1347 = vmatprep.subr.mxu0 0.0
          %v1348 = vand.u32 %v1152, 4294901760
          %v1349 = vsub.f32 %v1152, %v1348
          %1350 = vmatpush1.msra.mxu0 %v1349
          %1351 = vmatprep.subr.mxu0 0.0
          %v1352 = vand.u32 %v1158, 4294901760
          %v1353 = vsub.f32 %v1158, %v1352
          %1354 = vmatpush1.msra.mxu0 %v1353
          %1355 = vmatprep.subr.mxu0 0.0
          %1356 = vmatpush1.msra.mxu0 0.0
          %1357 = vmatprep.subr.mxu0 0.0
          %1358 = vmatpush1.msra.mxu0 0.0
          %1359 = vmatprep.subr.mxu0 0.0
          %1360 = vmatpush1.msra.mxu0 0.0
          %1361 = vmatprep.subr.mxu0 0.0
          %1362 = vmatpush1.msra.mxu0 0.0
          %1363 = vmatprep.subr.mxu0 0.0
          %1364 = vmatpush1.msra.mxu0 0.0
          %1365 = vmatprep.subr.mxu0 0.0
          %1366 = vmatpush1.msra.mxu0 0.0
          %1367 = vmatprep.subr.mxu0 0.0
          %1368 = vmatpush1.msra.mxu0 0.0
          %1369 = vmatprep.subr.mxu0 0.0
          %1370 = vmatpush1.msra.mxu0 0.0
          %1371 = vmatprep.subr.mxu0 0.0
          %1372 = vmatpush1.msra.mxu0 0.0
          %1373 = vmatprep.subr.mxu0 0.0
          %1374 = vmatpush1.msra.mxu0 0.0
          %1375 = vmatprep.subr.mxu0 0.0
          %1376 = vmatpush1.msra.mxu0 0.0
          %1377 = vmatprep.subr.mxu0 0.0
          %1378 = vmatpush1.msra.mxu0 0.0
          %1379 = vmatprep.subr.mxu0 0.0
          %1380 = vmatpush1.msra.mxu0 0.0
          %1381 = vmatprep.subr.mxu0 0.0
          %1382 = vmatpush1.msra.mxu0 0.0
          %1383 = vmatprep.subr.mxu0 0.0
          %1384 = vmatpush1.msra.mxu0 0.0
          %1385 = vmatprep.subr.mxu0 0.0
          %1386 = vmatpush1.msra.mxu0 0.0
          %1387 = vmatprep.subr.mxu0 0.0
          %1388 = vmatpush1.msra.mxu0 0.0
          %1389 = vmatprep.subr.mxu0 0.0
          %1390 = vmatpush1.msra.mxu0 0.0
          %1391 = vmatprep.subr.mxu0 0.0
          %1392 = vmatpush1.msra.mxu0 0.0
          %1393 = vmatprep.subr.mxu0 0.0
          %1394 = vmatpush1.msra.mxu0 0.0
          %1395 = vmatprep.subr.mxu0 0.0
          %1396 = vmatpush1.msra.mxu0 0.0
          %1397 = vmatprep.subr.mxu0 0.0
          %1398 = vmatpush1.msra.mxu0 0.0
          %1399 = vmatprep.subr.mxu0 0.0
          %1400 = vmatpush1.msra.mxu0 0.0
          %1401 = vmatprep.subr.mxu0 0.0
          %1402 = vmatpush1.msra.mxu0 0.0
          %1403 = vmatprep.subr.mxu0 0.0
          %1404 = vmatpush1.msra.mxu0 0.0
          %1405 = vmatprep.subr.mxu0 0.0
          %1406 = vmatpush1.msra.mxu0 0.0
          %1407 = vmatprep.subr.mxu0 0.0
          %1408 = vmatpush1.msra.mxu0 0.0
          %1409 = vmatprep.subr.mxu0 0.0
          %1410 = vmatpush1.msra.mxu0 0.0
          %1411 = vmatprep.subr.mxu0 0.0
          %1412 = vmatpush1.msra.mxu0 0.0
          %1413 = vmatprep.subr.mxu0 0.0
          %1414 = vmatpush1.msra.mxu0 0.0
          %1415 = vmatprep.mubr.f32.mxu0 0.0
          %v1416 = vand.u32 %v580, 4294901760
          %v1417 = vsub.f32 %v580, %v1416
          %1418 = vmatmul.mubr.f32.gmra.mrb[0].mxu0 %v1417
          %v1419 = vpop.f32.mrb[0].mxu0
          %v1420 = vadd.f32 %v1338, %v1419
          %v1421 = vpop.f32.mrb[0].mxu0
          %1422 = vmatprep.mubr.f32.mxu0 0.0
          %v1423 = vand.u32 %v583, 4294901760
          %v1424 = vsub.f32 %v583, %v1423
          %1425 = vmatmul.mubr.f32.gmra.mrb[0].mxu0 %v1424
          %v1426 = vpop.f32.mrb[0].mxu0
          %v1427 = vadd.f32 %v1344, %v1426
          %v1428 = vpop.f32.mrb[0].mxu0
          %1429 = vdwg.mxu0
          %1430 = vmatprep.subr.mxu0 0.0
          %v1431 = vand.u32 %v1152, 4294901760
          %1432 = vmatpush1.msra.mxu0 %v1431
          %1433 = vmatprep.subr.mxu0 0.0
          %v1434 = vand.u32 %v1158, 4294901760
          %1435 = vmatpush1.msra.mxu0 %v1434
          %1436 = vmatprep.subr.mxu0 0.0
          %1437 = vmatpush1.msra.mxu0 0.0
          %1438 = vmatprep.subr.mxu0 0.0
          %1439 = vmatpush1.msra.mxu0 0.0
          %1440 = vmatprep.subr.mxu0 0.0
          %1441 = vmatpush1.msra.mxu0 0.0
          %1442 = vmatprep.subr.mxu0 0.0
          %1443 = vmatpush1.msra.mxu0 0.0
          %1444 = vmatprep.subr.mxu0 0.0
          %1445 = vmatpush1.msra.mxu0 0.0
          %1446 = vmatprep.subr.mxu0 0.0
          %1447 = vmatpush1.msra.mxu0 0.0
          %1448 = vmatprep.subr.mxu0 0.0
          %1449 = vmatpush1.msra.mxu0 0.0
          %1450 = vmatprep.subr.mxu0 0.0
          %1451 = vmatpush1.msra.mxu0 0.0
          %1452 = vmatprep.subr.mxu0 0.0
          %1453 = vmatpush1.msra.mxu0 0.0
          %1454 = vmatprep.subr.mxu0 0.0
          %1455 = vmatpush1.msra.mxu0 0.0
          %1456 = vmatprep.subr.mxu0 0.0
          %1457 = vmatpush1.msra.mxu0 0.0
          %1458 = vmatprep.subr.mxu0 0.0
          %1459 = vmatpush1.msra.mxu0 0.0
          %1460 = vmatprep.subr.mxu0 0.0
          %1461 = vmatpush1.msra.mxu0 0.0
          %1462 = vmatprep.subr.mxu0 0.0
          %1463 = vmatpush1.msra.mxu0 0.0
          %1464 = vmatprep.subr.mxu0 0.0
          %1465 = vmatpush1.msra.mxu0 0.0
          %1466 = vmatprep.subr.mxu0 0.0
          %1467 = vmatpush1.msra.mxu0 0.0
          %1468 = vmatprep.subr.mxu0 0.0
          %1469 = vmatpush1.msra.mxu0 0.0
          %1470 = vmatprep.subr.mxu0 0.0
          %1471 = vmatpush1.msra.mxu0 0.0
          %1472 = vmatprep.subr.mxu0 0.0
          %1473 = vmatpush1.msra.mxu0 0.0
          %1474 = vmatprep.subr.mxu0 0.0
          %1475 = vmatpush1.msra.mxu0 0.0
          %1476 = vmatprep.subr.mxu0 0.0
          %1477 = vmatpush1.msra.mxu0 0.0
          %1478 = vmatprep.subr.mxu0 0.0
          %1479 = vmatpush1.msra.mxu0 0.0
          %1480 = vmatprep.subr.mxu0 0.0
          %1481 = vmatpush1.msra.mxu0 0.0
          %1482 = vmatprep.subr.mxu0 0.0
          %1483 = vmatpush1.msra.mxu0 0.0
          %1484 = vmatprep.subr.mxu0 0.0
          %1485 = vmatpush1.msra.mxu0 0.0
          %1486 = vmatprep.subr.mxu0 0.0
          %1487 = vmatpush1.msra.mxu0 0.0
          %1488 = vmatprep.subr.mxu0 0.0
          %1489 = vmatpush1.msra.mxu0 0.0
          %1490 = vmatprep.subr.mxu0 0.0
          %1491 = vmatpush1.msra.mxu0 0.0
          %1492 = vmatprep.subr.mxu0 0.0
          %1493 = vmatpush1.msra.mxu0 0.0
          %1494 = vmatprep.subr.mxu0 0.0
          %1495 = vmatpush1.msra.mxu0 0.0
          %1496 = vmatprep.mubr.f32.mxu0 0.0
          %v1497 = vand.u32 %v580, 4294901760
          %v1498 = vsub.f32 %v580, %v1497
          %v1499 = vand.u32 %v1498, 4294901760
          %1500 = vmatmul.mubr.f32.gmra.mrb[0].mxu0 %v1499
          %v1501 = vpop.f32.mrb[0].mxu0
          %v1502 = vadd.f32 %v1420, %v1501
          %v1503 = vpop.f32.mrb[0].mxu0
          %1504 = vmatprep.mubr.f32.mxu0 0.0
          %v1505 = vand.u32 %v583, 4294901760
          %v1506 = vsub.f32 %v583, %v1505
          %v1507 = vand.u32 %v1506, 4294901760
          %1508 = vmatmul.mubr.f32.gmra.mrb[0].mxu0 %v1507
          %v1509 = vpop.f32.mrb[0].mxu0
          %v1510 = vadd.f32 %v1427, %v1509
          %v1511 = vpop.f32.mrb[0].mxu0
          %1512 = vdwg.mxu0
          %1513 = vmatprep.subr.mxu0 0.0
          %v1514 = vand.u32 %v1152, 4294901760
          %v1515 = vsub.f32 %v1152, %v1514
          %v1516 = vand.u32 %v1515, 4294901760
          %1517 = vmatpush1.msra.mxu0 %v1516
          %1518 = vmatprep.subr.mxu0 0.0
          %v1519 = vand.u32 %v1158, 4294901760
          %v1520 = vsub.f32 %v1158, %v1519
          %v1521 = vand.u32 %v1520, 4294901760
          %1522 = vmatpush1.msra.mxu0 %v1521
          %1523 = vmatprep.subr.mxu0 0.0
          %1524 = vmatpush1.msra.mxu0 0.0
          %1525 = vmatprep.subr.mxu0 0.0
          %1526 = vmatpush1.msra.mxu0 0.0
          %1527 = vmatprep.subr.mxu0 0.0
          %1528 = vmatpush1.msra.mxu0 0.0
          %1529 = vmatprep.subr.mxu0 0.0
          %1530 = vmatpush1.msra.mxu0 0.0
          %1531 = vmatprep.subr.mxu0 0.0
          %1532 = vmatpush1.msra.mxu0 0.0
          %1533 = vmatprep.subr.mxu0 0.0
          %1534 = vmatpush1.msra.mxu0 0.0
          %1535 = vmatprep.subr.mxu0 0.0
          %1536 = vmatpush1.msra.mxu0 0.0
          %1537 = vmatprep.subr.mxu0 0.0
          %1538 = vmatpush1.msra.mxu0 0.0
          %1539 = vmatprep.subr.mxu0 0.0
          %1540 = vmatpush1.msra.mxu0 0.0
          %1541 = vmatprep.subr.mxu0 0.0
          %1542 = vmatpush1.msra.mxu0 0.0
          %1543 = vmatprep.subr.mxu0 0.0
          %1544 = vmatpush1.msra.mxu0 0.0
          %1545 = vmatprep.subr.mxu0 0.0
          %1546 = vmatpush1.msra.mxu0 0.0
          %1547 = vmatprep.subr.mxu0 0.0
          %1548 = vmatpush1.msra.mxu0 0.0
          %1549 = vmatprep.subr.mxu0 0.0
          %1550 = vmatpush1.msra.mxu0 0.0
          %1551 = vmatprep.subr.mxu0 0.0
          %1552 = vmatpush1.msra.mxu0 0.0
          %1553 = vmatprep.subr.mxu0 0.0
          %1554 = vmatpush1.msra.mxu0 0.0
          %1555 = vmatprep.subr.mxu0 0.0
          %1556 = vmatpush1.msra.mxu0 0.0
          %1557 = vmatprep.subr.mxu0 0.0
          %1558 = vmatpush1.msra.mxu0 0.0
          %1559 = vmatprep.subr.mxu0 0.0
          %1560 = vmatpush1.msra.mxu0 0.0
          %1561 = vmatprep.subr.mxu0 0.0
          %1562 = vmatpush1.msra.mxu0 0.0
          %1563 = vmatprep.subr.mxu0 0.0
          %1564 = vmatpush1.msra.mxu0 0.0
          %1565 = vmatprep.subr.mxu0 0.0
          %1566 = vmatpush1.msra.mxu0 0.0
          %1567 = vmatprep.subr.mxu0 0.0
          %1568 = vmatpush1.msra.mxu0 0.0
          %1569 = vmatprep.subr.mxu0 0.0
          %1570 = vmatpush1.msra.mxu0 0.0
          %1571 = vmatprep.subr.mxu0 0.0
          %1572 = vmatpush1.msra.mxu0 0.0
          %1573 = vmatprep.subr.mxu0 0.0
          %1574 = vmatpush1.msra.mxu0 0.0
          %1575 = vmatprep.subr.mxu0 0.0
          %1576 = vmatpush1.msra.mxu0 0.0
          %1577 = vmatprep.subr.mxu0 0.0
          %1578 = vmatpush1.msra.mxu0 0.0
          %1579 = vmatprep.subr.mxu0 0.0
          %1580 = vmatpush1.msra.mxu0 0.0
          %1581 = vmatprep.subr.mxu0 0.0
          %1582 = vmatpush1.msra.mxu0 0.0
          %1583 = vmatprep.mubr.f32.mxu0 0.0
          %v1584 = vand.u32 %v580, 4294901760
          %1585 = vmatmul.mubr.f32.gmra.mrb[0].mxu0 %v1584
          %v1586 = vpop.f32.mrb[0].mxu0
          %v1587 = vadd.f32 %v1502, %v1586
          %v1588 = vpop.f32.mrb[0].mxu0
          %1589 = vmatprep.mubr.f32.mxu0 0.0
          %v1590 = vand.u32 %v583, 4294901760
          %1591 = vmatmul.mubr.f32.gmra.mrb[0].mxu0 %v1590
          %v1592 = vpop.f32.mrb[0].mxu0
          %v1593 = vadd.f32 %v1510, %v1592
          %v1594 = vpop.f32.mrb[0].mxu0
          %1595 = vdwg.mxu0
          %1596 = vmatprep.subr.mxu0 0.0
          %v1597 = vand.u32 %v1152, 4294901760
          %1598 = vmatpush1.msra.mxu0 %v1597
          %1599 = vmatprep.subr.mxu0 0.0
          %v1600 = vand.u32 %v1158, 4294901760
          %1601 = vmatpush1.msra.mxu0 %v1600
          %1602 = vmatprep.subr.mxu0 0.0
          %1603 = vmatpush1.msra.mxu0 0.0
          %1604 = vmatprep.subr.mxu0 0.0
          %1605 = vmatpush1.msra.mxu0 0.0
          %1606 = vmatprep.subr.mxu0 0.0
          %1607 = vmatpush1.msra.mxu0 0.0
          %1608 = vmatprep.subr.mxu0 0.0
          %1609 = vmatpush1.msra.mxu0 0.0
          %1610 = vmatprep.subr.mxu0 0.0
          %1611 = vmatpush1.msra.mxu0 0.0
          %1612 = vmatprep.subr.mxu0 0.0
          %1613 = vmatpush1.msra.mxu0 0.0
          %1614 = vmatprep.subr.mxu0 0.0
          %1615 = vmatpush1.msra.mxu0 0.0
          %1616 = vmatprep.subr.mxu0 0.0
          %1617 = vmatpush1.msra.mxu0 0.0
          %1618 = vmatprep.subr.mxu0 0.0
          %1619 = vmatpush1.msra.mxu0 0.0
          %1620 = vmatprep.subr.mxu0 0.0
          %1621 = vmatpush1.msra.mxu0 0.0
          %1622 = vmatprep.subr.mxu0 0.0
          %1623 = vmatpush1.msra.mxu0 0.0
          %1624 = vmatprep.subr.mxu0 0.0
          %1625 = vmatpush1.msra.mxu0 0.0
          %1626 = vmatprep.subr.mxu0 0.0
          %1627 = vmatpush1.msra.mxu0 0.0
          %1628 = vmatprep.subr.mxu0 0.0
          %1629 = vmatpush1.msra.mxu0 0.0
          %1630 = vmatprep.subr.mxu0 0.0
          %1631 = vmatpush1.msra.mxu0 0.0
          %1632 = vmatprep.subr.mxu0 0.0
          %1633 = vmatpush1.msra.mxu0 0.0
          %1634 = vmatprep.subr.mxu0 0.0
          %1635 = vmatpush1.msra.mxu0 0.0
          %1636 = vmatprep.subr.mxu0 0.0
          %1637 = vmatpush1.msra.mxu0 0.0
          %1638 = vmatprep.subr.mxu0 0.0
          %1639 = vmatpush1.msra.mxu0 0.0
          %1640 = vmatprep.subr.mxu0 0.0
          %1641 = vmatpush1.msra.mxu0 0.0
          %1642 = vmatprep.subr.mxu0 0.0
          %1643 = vmatpush1.msra.mxu0 0.0
          %1644 = vmatprep.subr.mxu0 0.0
          %1645 = vmatpush1.msra.mxu0 0.0
          %1646 = vmatprep.subr.mxu0 0.0
          %1647 = vmatpush1.msra.mxu0 0.0
          %1648 = vmatprep.subr.mxu0 0.0
          %1649 = vmatpush1.msra.mxu0 0.0
          %1650 = vmatprep.subr.mxu0 0.0
          %1651 = vmatpush1.msra.mxu0 0.0
          %1652 = vmatprep.subr.mxu0 0.0
          %1653 = vmatpush1.msra.mxu0 0.0
          %1654 = vmatprep.subr.mxu0 0.0
          %1655 = vmatpush1.msra.mxu0 0.0
          %1656 = vmatprep.subr.mxu0 0.0
          %1657 = vmatpush1.msra.mxu0 0.0
          %1658 = vmatprep.subr.mxu0 0.0
          %1659 = vmatpush1.msra.mxu0 0.0
          %1660 = vmatprep.subr.mxu0 0.0
          %1661 = vmatpush1.msra.mxu0 0.0
          %1662 = vmatprep.mubr.f32.mxu0 0.0
          %v1663 = vand.u32 %v580, 4294901760
          %1664 = vmatmul.mubr.f32.gmra.mrb[0].mxu0 %v1663
          %v1665 = vpop.f32.mrb[0].mxu0
          %v1666 = vadd.f32 %v1587, %v1665
          %v1667 = vpop.f32.mrb[0].mxu0
          %1668 = vmatprep.mubr.f32.mxu0 0.0
          %v1669 = vand.u32 %v583, 4294901760
          %1670 = vmatmul.mubr.f32.gmra.mrb[0].mxu0 %v1669
          %v1671 = vpop.f32.mrb[0].mxu0
          %v1672 = vadd.f32 %v1593, %v1671
          %v1673 = vpop.f32.mrb[0].mxu0
          %1674 = vdwg.mxu0
          %1675 = vmatprep.subr.mxu0 0.0
          %v1676 = vand.u32 %v1164, 4294901760
          %1677 = vmatpush1.msra.mxu0 %v1676
          %1678 = vmatprep.subr.mxu0 0.0
          %v1679 = vand.u32 %v1170, 4294901760
          %1680 = vmatpush1.msra.mxu0 %v1679
          %1681 = vmatprep.subr.mxu0 0.0
          %1682 = vmatpush1.msra.mxu0 0.0
          %1683 = vmatprep.subr.mxu0 0.0
          %1684 = vmatpush1.msra.mxu0 0.0
          %1685 = vmatprep.subr.mxu0 0.0
          %1686 = vmatpush1.msra.mxu0 0.0
          %1687 = vmatprep.subr.mxu0 0.0
          %1688 = vmatpush1.msra.mxu0 0.0
          %1689 = vmatprep.subr.mxu0 0.0
          %1690 = vmatpush1.msra.mxu0 0.0
          %1691 = vmatprep.subr.mxu0 0.0
          %1692 = vmatpush1.msra.mxu0 0.0
          %1693 = vmatprep.subr.mxu0 0.0
          %1694 = vmatpush1.msra.mxu0 0.0
          %1695 = vmatprep.subr.mxu0 0.0
          %1696 = vmatpush1.msra.mxu0 0.0
          %1697 = vmatprep.subr.mxu0 0.0
          %1698 = vmatpush1.msra.mxu0 0.0
          %1699 = vmatprep.subr.mxu0 0.0
          %1700 = vmatpush1.msra.mxu0 0.0
          %1701 = vmatprep.subr.mxu0 0.0
          %1702 = vmatpush1.msra.mxu0 0.0
          %1703 = vmatprep.subr.mxu0 0.0
          %1704 = vmatpush1.msra.mxu0 0.0
          %1705 = vmatprep.subr.mxu0 0.0
          %1706 = vmatpush1.msra.mxu0 0.0
          %1707 = vmatprep.subr.mxu0 0.0
          %1708 = vmatpush1.msra.mxu0 0.0
          %1709 = vmatprep.subr.mxu0 0.0
          %1710 = vmatpush1.msra.mxu0 0.0
          %1711 = vmatprep.subr.mxu0 0.0
          %1712 = vmatpush1.msra.mxu0 0.0
          %1713 = vmatprep.subr.mxu0 0.0
          %1714 = vmatpush1.msra.mxu0 0.0
          %1715 = vmatprep.subr.mxu0 0.0
          %1716 = vmatpush1.msra.mxu0 0.0
          %1717 = vmatprep.subr.mxu0 0.0
          %1718 = vmatpush1.msra.mxu0 0.0
          %1719 = vmatprep.subr.mxu0 0.0
          %1720 = vmatpush1.msra.mxu0 0.0
          %1721 = vmatprep.subr.mxu0 0.0
          %1722 = vmatpush1.msra.mxu0 0.0
          %1723 = vmatprep.subr.mxu0 0.0
          %1724 = vmatpush1.msra.mxu0 0.0
          %1725 = vmatprep.subr.mxu0 0.0
          %1726 = vmatpush1.msra.mxu0 0.0
          %1727 = vmatprep.subr.mxu0 0.0
          %1728 = vmatpush1.msra.mxu0 0.0
          %1729 = vmatprep.subr.mxu0 0.0
          %1730 = vmatpush1.msra.mxu0 0.0
          %1731 = vmatprep.subr.mxu0 0.0
          %1732 = vmatpush1.msra.mxu0 0.0
          %1733 = vmatprep.subr.mxu0 0.0
          %1734 = vmatpush1.msra.mxu0 0.0
          %1735 = vmatprep.subr.mxu0 0.0
          %1736 = vmatpush1.msra.mxu0 0.0
          %1737 = vmatprep.subr.mxu0 0.0
          %1738 = vmatpush1.msra.mxu0 0.0
          %1739 = vmatprep.subr.mxu0 0.0
          %1740 = vmatpush1.msra.mxu0 0.0
          %1741 = vmatprep.mubr.f32.mxu0 0.0
          %v1742 = vand.u32 %v580, 4294901760
          %v1743 = vsub.f32 %v580, %v1742
          %v1744 = vand.u32 %v1743, 4294901760
          %v1745 = vsub.f32 %v1743, %v1744
          %v1746 = vand.u32 %v1745, 4294901760
          %1747 = vmatmul.mubr.f32.gmra.mrb[0].mxu0 %v1746
          %v1748 = vpop.f32.mrb[0].mxu0
          %v1749 = vadd.f32 0.0, %v1748
          %v1750 = vpop.f32.mrb[0].mxu0
          %1751 = vmatprep.mubr.f32.mxu0 0.0
          %v1752 = vand.u32 %v583, 4294901760
          %v1753 = vsub.f32 %v583, %v1752
          %v1754 = vand.u32 %v1753, 4294901760
          %v1755 = vsub.f32 %v1753, %v1754
          %v1756 = vand.u32 %v1755, 4294901760
          %1757 = vmatmul.mubr.f32.gmra.mrb[0].mxu0 %v1756
          %v1758 = vpop.f32.mrb[0].mxu0
          %v1759 = vadd.f32 0.0, %v1758
          %v1760 = vpop.f32.mrb[0].mxu0
          %1761 = vdwg.mxu0
          %1762 = vmatprep.subr.mxu0 0.0
          %v1763 = vand.u32 %v1164, 4294901760
          %v1764 = vsub.f32 %v1164, %v1763
          %v1765 = vand.u32 %v1764, 4294901760
          %v1766 = vsub.f32 %v1764, %v1765
          %v1767 = vand.u32 %v1766, 4294901760
          %1768 = vmatpush1.msra.mxu0 %v1767
          %1769 = vmatprep.subr.mxu0 0.0
          %v1770 = vand.u32 %v1170, 4294901760
          %v1771 = vsub.f32 %v1170, %v1770
          %v1772 = vand.u32 %v1771, 4294901760
          %v1773 = vsub.f32 %v1771, %v1772
          %v1774 = vand.u32 %v1773, 4294901760
          %1775 = vmatpush1.msra.mxu0 %v1774
          %1776 = vmatprep.subr.mxu0 0.0
          %1777 = vmatpush1.msra.mxu0 0.0
          %1778 = vmatprep.subr.mxu0 0.0
          %1779 = vmatpush1.msra.mxu0 0.0
          %1780 = vmatprep.subr.mxu0 0.0
          %1781 = vmatpush1.msra.mxu0 0.0
          %1782 = vmatprep.subr.mxu0 0.0
          %1783 = vmatpush1.msra.mxu0 0.0
          %1784 = vmatprep.subr.mxu0 0.0
          %1785 = vmatpush1.msra.mxu0 0.0
          %1786 = vmatprep.subr.mxu0 0.0
          %1787 = vmatpush1.msra.mxu0 0.0
          %1788 = vmatprep.subr.mxu0 0.0
          %1789 = vmatpush1.msra.mxu0 0.0
          %1790 = vmatprep.subr.mxu0 0.0
          %1791 = vmatpush1.msra.mxu0 0.0
          %1792 = vmatprep.subr.mxu0 0.0
          %1793 = vmatpush1.msra.mxu0 0.0
          %1794 = vmatprep.subr.mxu0 0.0
          %1795 = vmatpush1.msra.mxu0 0.0
          %1796 = vmatprep.subr.mxu0 0.0
          %1797 = vmatpush1.msra.mxu0 0.0
          %1798 = vmatprep.subr.mxu0 0.0
          %1799 = vmatpush1.msra.mxu0 0.0
          %1800 = vmatprep.subr.mxu0 0.0
          %1801 = vmatpush1.msra.mxu0 0.0
          %1802 = vmatprep.subr.mxu0 0.0
          %1803 = vmatpush1.msra.mxu0 0.0
          %1804 = vmatprep.subr.mxu0 0.0
          %1805 = vmatpush1.msra.mxu0 0.0
          %1806 = vmatprep.subr.mxu0 0.0
          %1807 = vmatpush1.msra.mxu0 0.0
          %1808 = vmatprep.subr.mxu0 0.0
          %1809 = vmatpush1.msra.mxu0 0.0
          %1810 = vmatprep.subr.mxu0 0.0
          %1811 = vmatpush1.msra.mxu0 0.0
          %1812 = vmatprep.subr.mxu0 0.0
          %1813 = vmatpush1.msra.mxu0 0.0
          %1814 = vmatprep.subr.mxu0 0.0
          %1815 = vmatpush1.msra.mxu0 0.0
          %1816 = vmatprep.subr.mxu0 0.0
          %1817 = vmatpush1.msra.mxu0 0.0
          %1818 = vmatprep.subr.mxu0 0.0
          %1819 = vmatpush1.msra.mxu0 0.0
          %1820 = vmatprep.subr.mxu0 0.0
          %1821 = vmatpush1.msra.mxu0 0.0
          %1822 = vmatprep.subr.mxu0 0.0
          %1823 = vmatpush1.msra.mxu0 0.0
          %1824 = vmatprep.subr.mxu0 0.0
          %1825 = vmatpush1.msra.mxu0 0.0
          %1826 = vmatprep.subr.mxu0 0.0
          %1827 = vmatpush1.msra.mxu0 0.0
          %1828 = vmatprep.subr.mxu0 0.0
          %1829 = vmatpush1.msra.mxu0 0.0
          %1830 = vmatprep.subr.mxu0 0.0
          %1831 = vmatpush1.msra.mxu0 0.0
          %1832 = vmatprep.subr.mxu0 0.0
          %1833 = vmatpush1.msra.mxu0 0.0
          %1834 = vmatprep.subr.mxu0 0.0
          %1835 = vmatpush1.msra.mxu0 0.0
          %1836 = vmatprep.mubr.f32.mxu0 0.0
          %v1837 = vand.u32 %v580, 4294901760
          %1838 = vmatmul.mubr.f32.gmra.mrb[0].mxu0 %v1837
          %v1839 = vpop.f32.mrb[0].mxu0
          %v1840 = vadd.f32 %v1749, %v1839
          %v1841 = vpop.f32.mrb[0].mxu0
          %1842 = vmatprep.mubr.f32.mxu0 0.0
          %v1843 = vand.u32 %v583, 4294901760
          %1844 = vmatmul.mubr.f32.gmra.mrb[0].mxu0 %v1843
          %v1845 = vpop.f32.mrb[0].mxu0
          %v1846 = vadd.f32 %v1759, %v1845
          %v1847 = vpop.f32.mrb[0].mxu0
          %1848 = vdwg.mxu0
          %1849 = vmatprep.subr.mxu0 0.0
          %v1850 = vand.u32 %v1164, 4294901760
          %v1851 = vsub.f32 %v1164, %v1850
          %1852 = vmatpush1.msra.mxu0 %v1851
          %1853 = vmatprep.subr.mxu0 0.0
          %v1854 = vand.u32 %v1170, 4294901760
          %v1855 = vsub.f32 %v1170, %v1854
          %1856 = vmatpush1.msra.mxu0 %v1855
          %1857 = vmatprep.subr.mxu0 0.0
          %1858 = vmatpush1.msra.mxu0 0.0
          %1859 = vmatprep.subr.mxu0 0.0
          %1860 = vmatpush1.msra.mxu0 0.0
          %1861 = vmatprep.subr.mxu0 0.0
          %1862 = vmatpush1.msra.mxu0 0.0
          %1863 = vmatprep.subr.mxu0 0.0
          %1864 = vmatpush1.msra.mxu0 0.0
          %1865 = vmatprep.subr.mxu0 0.0
          %1866 = vmatpush1.msra.mxu0 0.0
          %1867 = vmatprep.subr.mxu0 0.0
          %1868 = vmatpush1.msra.mxu0 0.0
          %1869 = vmatprep.subr.mxu0 0.0
          %1870 = vmatpush1.msra.mxu0 0.0
          %1871 = vmatprep.subr.mxu0 0.0
          %1872 = vmatpush1.msra.mxu0 0.0
          %1873 = vmatprep.subr.mxu0 0.0
          %1874 = vmatpush1.msra.mxu0 0.0
          %1875 = vmatprep.subr.mxu0 0.0
          %1876 = vmatpush1.msra.mxu0 0.0
          %1877 = vmatprep.subr.mxu0 0.0
          %1878 = vmatpush1.msra.mxu0 0.0
          %1879 = vmatprep.subr.mxu0 0.0
          %1880 = vmatpush1.msra.mxu0 0.0
          %1881 = vmatprep.subr.mxu0 0.0
          %1882 = vmatpush1.msra.mxu0 0.0
          %1883 = vmatprep.subr.mxu0 0.0
          %1884 = vmatpush1.msra.mxu0 0.0
          %1885 = vmatprep.subr.mxu0 0.0
          %1886 = vmatpush1.msra.mxu0 0.0
          %1887 = vmatprep.subr.mxu0 0.0
          %1888 = vmatpush1.msra.mxu0 0.0
          %1889 = vmatprep.subr.mxu0 0.0
          %1890 = vmatpush1.msra.mxu0 0.0
          %1891 = vmatprep.subr.mxu0 0.0
          %1892 = vmatpush1.msra.mxu0 0.0
          %1893 = vmatprep.subr.mxu0 0.0
          %1894 = vmatpush1.msra.mxu0 0.0
          %1895 = vmatprep.subr.mxu0 0.0
          %1896 = vmatpush1.msra.mxu0 0.0
          %1897 = vmatprep.subr.mxu0 0.0
          %1898 = vmatpush1.msra.mxu0 0.0
          %1899 = vmatprep.subr.mxu0 0.0
          %1900 = vmatpush1.msra.mxu0 0.0
          %1901 = vmatprep.subr.mxu0 0.0
          %1902 = vmatpush1.msra.mxu0 0.0
          %1903 = vmatprep.subr.mxu0 0.0
          %1904 = vmatpush1.msra.mxu0 0.0
          %1905 = vmatprep.subr.mxu0 0.0
          %1906 = vmatpush1.msra.mxu0 0.0
          %1907 = vmatprep.subr.mxu0 0.0
          %1908 = vmatpush1.msra.mxu0 0.0
          %1909 = vmatprep.subr.mxu0 0.0
          %1910 = vmatpush1.msra.mxu0 0.0
          %1911 = vmatprep.subr.mxu0 0.0
          %1912 = vmatpush1.msra.mxu0 0.0
          %1913 = vmatprep.subr.mxu0 0.0
          %1914 = vmatpush1.msra.mxu0 0.0
          %1915 = vmatprep.subr.mxu0 0.0
          %1916 = vmatpush1.msra.mxu0 0.0
          %1917 = vmatprep.mubr.f32.mxu0 0.0
          %v1918 = vand.u32 %v580, 4294901760
          %v1919 = vsub.f32 %v580, %v1918
          %1920 = vmatmul.mubr.f32.gmra.mrb[0].mxu0 %v1919
          %v1921 = vpop.f32.mrb[0].mxu0
          %v1922 = vadd.f32 %v1840, %v1921
          %v1923 = vpop.f32.mrb[0].mxu0
          %1924 = vmatprep.mubr.f32.mxu0 0.0
          %v1925 = vand.u32 %v583, 4294901760
          %v1926 = vsub.f32 %v583, %v1925
          %1927 = vmatmul.mubr.f32.gmra.mrb[0].mxu0 %v1926
          %v1928 = vpop.f32.mrb[0].mxu0
          %v1929 = vadd.f32 %v1846, %v1928
          %v1930 = vpop.f32.mrb[0].mxu0
          %1931 = vdwg.mxu0
          %1932 = vmatprep.subr.mxu0 0.0
          %v1933 = vand.u32 %v1164, 4294901760
          %1934 = vmatpush1.msra.mxu0 %v1933
          %1935 = vmatprep.subr.mxu0 0.0
          %v1936 = vand.u32 %v1170, 4294901760
          %1937 = vmatpush1.msra.mxu0 %v1936
          %1938 = vmatprep.subr.mxu0 0.0
          %1939 = vmatpush1.msra.mxu0 0.0
          %1940 = vmatprep.subr.mxu0 0.0
          %1941 = vmatpush1.msra.mxu0 0.0
          %1942 = vmatprep.subr.mxu0 0.0
          %1943 = vmatpush1.msra.mxu0 0.0
          %1944 = vmatprep.subr.mxu0 0.0
          %1945 = vmatpush1.msra.mxu0 0.0
          %1946 = vmatprep.subr.mxu0 0.0
          %1947 = vmatpush1.msra.mxu0 0.0
          %1948 = vmatprep.subr.mxu0 0.0
          %1949 = vmatpush1.msra.mxu0 0.0
          %1950 = vmatprep.subr.mxu0 0.0
          %1951 = vmatpush1.msra.mxu0 0.0
          %1952 = vmatprep.subr.mxu0 0.0
          %1953 = vmatpush1.msra.mxu0 0.0
          %1954 = vmatprep.subr.mxu0 0.0
          %1955 = vmatpush1.msra.mxu0 0.0
          %1956 = vmatprep.subr.mxu0 0.0
          %1957 = vmatpush1.msra.mxu0 0.0
          %1958 = vmatprep.subr.mxu0 0.0
          %1959 = vmatpush1.msra.mxu0 0.0
          %1960 = vmatprep.subr.mxu0 0.0
          %1961 = vmatpush1.msra.mxu0 0.0
          %1962 = vmatprep.subr.mxu0 0.0
          %1963 = vmatpush1.msra.mxu0 0.0
          %1964 = vmatprep.subr.mxu0 0.0
          %1965 = vmatpush1.msra.mxu0 0.0
          %1966 = vmatprep.subr.mxu0 0.0
          %1967 = vmatpush1.msra.mxu0 0.0
          %1968 = vmatprep.subr.mxu0 0.0
          %1969 = vmatpush1.msra.mxu0 0.0
          %1970 = vmatprep.subr.mxu0 0.0
          %1971 = vmatpush1.msra.mxu0 0.0
          %1972 = vmatprep.subr.mxu0 0.0
          %1973 = vmatpush1.msra.mxu0 0.0
          %1974 = vmatprep.subr.mxu0 0.0
          %1975 = vmatpush1.msra.mxu0 0.0
          %1976 = vmatprep.subr.mxu0 0.0
          %1977 = vmatpush1.msra.mxu0 0.0
          %1978 = vmatprep.subr.mxu0 0.0
          %1979 = vmatpush1.msra.mxu0 0.0
          %1980 = vmatprep.subr.mxu0 0.0
          %1981 = vmatpush1.msra.mxu0 0.0
          %1982 = vmatprep.subr.mxu0 0.0
          %1983 = vmatpush1.msra.mxu0 0.0
          %1984 = vmatprep.subr.mxu0 0.0
          %1985 = vmatpush1.msra.mxu0 0.0
          %1986 = vmatprep.subr.mxu0 0.0
          %1987 = vmatpush1.msra.mxu0 0.0
          %1988 = vmatprep.subr.mxu0 0.0
          %1989 = vmatpush1.msra.mxu0 0.0
          %1990 = vmatprep.subr.mxu0 0.0
          %1991 = vmatpush1.msra.mxu0 0.0
          %1992 = vmatprep.subr.mxu0 0.0
          %1993 = vmatpush1.msra.mxu0 0.0
          %1994 = vmatprep.subr.mxu0 0.0
          %1995 = vmatpush1.msra.mxu0 0.0
          %1996 = vmatprep.subr.mxu0 0.0
          %1997 = vmatpush1.msra.mxu0 0.0
          %1998 = vmatprep.mubr.f32.mxu0 0.0
          %v1999 = vand.u32 %v580, 4294901760
          %v2000 = vsub.f32 %v580, %v1999
          %v2001 = vand.u32 %v2000, 4294901760
          %2002 = vmatmul.mubr.f32.gmra.mrb[0].mxu0 %v2001
          %v2003 = vpop.f32.mrb[0].mxu0
          %v2004 = vadd.f32 %v1922, %v2003
          %v2005 = vpop.f32.mrb[0].mxu0
          %2006 = vmatprep.mubr.f32.mxu0 0.0
          %v2007 = vand.u32 %v583, 4294901760
          %v2008 = vsub.f32 %v583, %v2007
          %v2009 = vand.u32 %v2008, 4294901760
          %2010 = vmatmul.mubr.f32.gmra.mrb[0].mxu0 %v2009
          %v2011 = vpop.f32.mrb[0].mxu0
          %v2012 = vadd.f32 %v1929, %v2011
          %v2013 = vpop.f32.mrb[0].mxu0
          %2014 = vdwg.mxu0
          %2015 = vmatprep.subr.mxu0 0.0
          %v2016 = vand.u32 %v1164, 4294901760
          %v2017 = vsub.f32 %v1164, %v2016
          %v2018 = vand.u32 %v2017, 4294901760
          %2019 = vmatpush1.msra.mxu0 %v2018
          %2020 = vmatprep.subr.mxu0 0.0
          %v2021 = vand.u32 %v1170, 4294901760
          %v2022 = vsub.f32 %v1170, %v2021
          %v2023 = vand.u32 %v2022, 4294901760
          %2024 = vmatpush1.msra.mxu0 %v2023
          %2025 = vmatprep.subr.mxu0 0.0
          %2026 = vmatpush1.msra.mxu0 0.0
          %2027 = vmatprep.subr.mxu0 0.0
          %2028 = vmatpush1.msra.mxu0 0.0
          %2029 = vmatprep.subr.mxu0 0.0
          %2030 = vmatpush1.msra.mxu0 0.0
          %2031 = vmatprep.subr.mxu0 0.0
          %2032 = vmatpush1.msra.mxu0 0.0
          %2033 = vmatprep.subr.mxu0 0.0
          %2034 = vmatpush1.msra.mxu0 0.0
          %2035 = vmatprep.subr.mxu0 0.0
          %2036 = vmatpush1.msra.mxu0 0.0
          %2037 = vmatprep.subr.mxu0 0.0
          %2038 = vmatpush1.msra.mxu0 0.0
          %2039 = vmatprep.subr.mxu0 0.0
          %2040 = vmatpush1.msra.mxu0 0.0
          %2041 = vmatprep.subr.mxu0 0.0
          %2042 = vmatpush1.msra.mxu0 0.0
          %2043 = vmatprep.subr.mxu0 0.0
          %2044 = vmatpush1.msra.mxu0 0.0
          %2045 = vmatprep.subr.mxu0 0.0
          %2046 = vmatpush1.msra.mxu0 0.0
          %2047 = vmatprep.subr.mxu0 0.0
          %2048 = vmatpush1.msra.mxu0 0.0
          %2049 = vmatprep.subr.mxu0 0.0
          %2050 = vmatpush1.msra.mxu0 0.0
          %2051 = vmatprep.subr.mxu0 0.0
          %2052 = vmatpush1.msra.mxu0 0.0
          %2053 = vmatprep.subr.mxu0 0.0
          %2054 = vmatpush1.msra.mxu0 0.0
          %2055 = vmatprep.subr.mxu0 0.0
          %2056 = vmatpush1.msra.mxu0 0.0
          %2057 = vmatprep.subr.mxu0 0.0
          %2058 = vmatpush1.msra.mxu0 0.0
          %2059 = vmatprep.subr.mxu0 0.0
          %2060 = vmatpush1.msra.mxu0 0.0
          %2061 = vmatprep.subr.mxu0 0.0
          %2062 = vmatpush1.msra.mxu0 0.0
          %2063 = vmatprep.subr.mxu0 0.0
          %2064 = vmatpush1.msra.mxu0 0.0
          %2065 = vmatprep.subr.mxu0 0.0
          %2066 = vmatpush1.msra.mxu0 0.0
          %2067 = vmatprep.subr.mxu0 0.0
          %2068 = vmatpush1.msra.mxu0 0.0
          %2069 = vmatprep.subr.mxu0 0.0
          %2070 = vmatpush1.msra.mxu0 0.0
          %2071 = vmatprep.subr.mxu0 0.0
          %2072 = vmatpush1.msra.mxu0 0.0
          %2073 = vmatprep.subr.mxu0 0.0
          %2074 = vmatpush1.msra.mxu0 0.0
          %2075 = vmatprep.subr.mxu0 0.0
          %2076 = vmatpush1.msra.mxu0 0.0
          %2077 = vmatprep.subr.mxu0 0.0
          %2078 = vmatpush1.msra.mxu0 0.0
          %2079 = vmatprep.subr.mxu0 0.0
          %2080 = vmatpush1.msra.mxu0 0.0
          %2081 = vmatprep.subr.mxu0 0.0
          %2082 = vmatpush1.msra.mxu0 0.0
          %2083 = vmatprep.subr.mxu0 0.0
          %2084 = vmatpush1.msra.mxu0 0.0
          %2085 = vmatprep.mubr.f32.mxu0 0.0
          %v2086 = vand.u32 %v580, 4294901760
          %2087 = vmatmul.mubr.f32.gmra.mrb[0].mxu0 %v2086
          %v2088 = vpop.f32.mrb[0].mxu0
          %v2089 = vadd.f32 %v2004, %v2088
          %v2090 = vpop.f32.mrb[0].mxu0
          %2091 = vmatprep.mubr.f32.mxu0 0.0
          %v2092 = vand.u32 %v583, 4294901760
          %2093 = vmatmul.mubr.f32.gmra.mrb[0].mxu0 %v2092
          %v2094 = vpop.f32.mrb[0].mxu0
          %v2095 = vadd.f32 %v2012, %v2094
          %v2096 = vpop.f32.mrb[0].mxu0
          %2097 = vdwg.mxu0
          %2098 = vmatprep.subr.mxu0 0.0
          %v2099 = vand.u32 %v1164, 4294901760
          %2100 = vmatpush1.msra.mxu0 %v2099
          %2101 = vmatprep.subr.mxu0 0.0
          %v2102 = vand.u32 %v1170, 4294901760
          %2103 = vmatpush1.msra.mxu0 %v2102
          %2104 = vmatprep.subr.mxu0 0.0
          %2105 = vmatpush1.msra.mxu0 0.0
          %2106 = vmatprep.subr.mxu0 0.0
          %2107 = vmatpush1.msra.mxu0 0.0
          %2108 = vmatprep.subr.mxu0 0.0
          %2109 = vmatpush1.msra.mxu0 0.0
          %2110 = vmatprep.subr.mxu0 0.0
          %2111 = vmatpush1.msra.mxu0 0.0
          %2112 = vmatprep.subr.mxu0 0.0
          %2113 = vmatpush1.msra.mxu0 0.0
          %2114 = vmatprep.subr.mxu0 0.0
          %2115 = vmatpush1.msra.mxu0 0.0
          %2116 = vmatprep.subr.mxu0 0.0
          %2117 = vmatpush1.msra.mxu0 0.0
          %2118 = vmatprep.subr.mxu0 0.0
          %2119 = vmatpush1.msra.mxu0 0.0
          %2120 = vmatprep.subr.mxu0 0.0
          %2121 = vmatpush1.msra.mxu0 0.0
          %2122 = vmatprep.subr.mxu0 0.0
          %2123 = vmatpush1.msra.mxu0 0.0
          %2124 = vmatprep.subr.mxu0 0.0
          %2125 = vmatpush1.msra.mxu0 0.0
          %2126 = vmatprep.subr.mxu0 0.0
          %2127 = vmatpush1.msra.mxu0 0.0
          %2128 = vmatprep.subr.mxu0 0.0
          %2129 = vmatpush1.msra.mxu0 0.0
          %2130 = vmatprep.subr.mxu0 0.0
          %2131 = vmatpush1.msra.mxu0 0.0
          %2132 = vmatprep.subr.mxu0 0.0
          %2133 = vmatpush1.msra.mxu0 0.0
          %2134 = vmatprep.subr.mxu0 0.0
          %2135 = vmatpush1.msra.mxu0 0.0
          %2136 = vmatprep.subr.mxu0 0.0
          %2137 = vmatpush1.msra.mxu0 0.0
          %2138 = vmatprep.subr.mxu0 0.0
          %2139 = vmatpush1.msra.mxu0 0.0
          %2140 = vmatprep.subr.mxu0 0.0
          %2141 = vmatpush1.msra.mxu0 0.0
          %2142 = vmatprep.subr.mxu0 0.0
          %2143 = vmatpush1.msra.mxu0 0.0
          %2144 = vmatprep.subr.mxu0 0.0
          %2145 = vmatpush1.msra.mxu0 0.0
          %2146 = vmatprep.subr.mxu0 0.0
          %2147 = vmatpush1.msra.mxu0 0.0
          %2148 = vmatprep.subr.mxu0 0.0
          %2149 = vmatpush1.msra.mxu0 0.0
          %2150 = vmatprep.subr.mxu0 0.0
          %2151 = vmatpush1.msra.mxu0 0.0
          %2152 = vmatprep.subr.mxu0 0.0
          %2153 = vmatpush1.msra.mxu0 0.0
          %2154 = vmatprep.subr.mxu0 0.0
          %2155 = vmatpush1.msra.mxu0 0.0
          %2156 = vmatprep.subr.mxu0 0.0
          %2157 = vmatpush1.msra.mxu0 0.0
          %2158 = vmatprep.subr.mxu0 0.0
          %2159 = vmatpush1.msra.mxu0 0.0
          %2160 = vmatprep.subr.mxu0 0.0
          %2161 = vmatpush1.msra.mxu0 0.0
          %2162 = vmatprep.subr.mxu0 0.0
          %2163 = vmatpush1.msra.mxu0 0.0
          %2164 = vmatprep.mubr.f32.mxu0 0.0
          %v2165 = vand.u32 %v580, 4294901760
          %2166 = vmatmul.mubr.f32.gmra.mrb[0].mxu0 %v2165
          %v2167 = vpop.f32.mrb[0].mxu0
          %v2168 = vadd.f32 %v2089, %v2167
          %v2169 = vpop.f32.mrb[0].mxu0
          %2170 = vmatprep.mubr.f32.mxu0 0.0
          %v2171 = vand.u32 %v583, 4294901760
          %2172 = vmatmul.mubr.f32.gmra.mrb[0].mxu0 %v2171
          %v2173 = vpop.f32.mrb[0].mxu0
          %v2174 = vadd.f32 %v2095, %v2173
          %v2175 = vpop.f32.mrb[0].mxu0
          %2176 = vdwg.mxu0
          %v2177 = vld [vmem:[#allocation13] sm:$0xff]
          %v2178 = vld [vmem:[#allocation13 + $0x8] sm:$0xff]
          %vm2179 = vcmp.eq.s32.totalorder %v2177, 1000000000
          %vm2180 = vcmp.eq.s32.totalorder %v2178, 1000000000
          %v2181 = vsub.f32 %v1666, %v2168
          %v2182 = vsub.f32 %v1672, %v2174
          %v2183 = vand.u32 2147483647, %v2181
          %v2184 = vand.u32 2147483647, %v2182
          %vm2185 = vcmp.gt.f32.partialorder %v2183, 0.05
          %vm2186 = vcmp.gt.f32.partialorder %v2184, 0.05
          %vm2187 = vmor %vm2185, %vm2179
          %vm2188 = vmor %vm2186, %vm2180
          %v2189 = vsel %vm2187, 1000000000, %v2177
          %v2190 = vsel %vm2188, 1000000000, %v2178
          %2191 = vst.msk [vmem:[#allocation13] sm:$0xff] %vm421, %v2189
          %2192 = vst.msk [vmem:[#allocation13 + $0x8] sm:$0xff] %vm421, %v2190
          %v2193 = vld [vmem:[#allocation14] sm:$0xff]
          %v2194 = vld [vmem:[#allocation14 + $0x8] sm:$0xff]
          %v2195 = vsel %vm2187, 1000000000, %v2193
          %v2196 = vsel %vm2188, 1000000000, %v2194
          %2197 = vst.msk [vmem:[#allocation14] sm:$0xff] %vm421, %v2195
          %2198 = vst.msk [vmem:[#allocation14 + $0x8] sm:$0xff] %vm421, %v2196
        $region63: #{tpu_custom_call.1} parent=35 // pred_fallthru
          _
        // Predicated region
        $region64: #{tpu_custom_call.1} parent=35 // pred_check
          %p2199 = pneg %p126
        $region65: #{tpu_custom_call.1} parent=35 // pred_check_branch
          %2201 = sbr.rel (%p2199) target = $region67
        $region66: #{tpu_custom_call.1} parent=35 // pred_region
          %s2203 = ssub.s32 256, 256
          %2204 = vsyncadd [#allocation7], %s2203
          %s2205 = sshll.u32 [#allocation13], 4
          %s2206 = int_to_ptr.vmem [resolvable:$true] %s2205
          %2211 = dma.vmem_to_hbm [thread:$0]  %s2206, 256, %s4, [#allocation7], 128, 128, 8
        $region67: #{tpu_custom_call.1} parent=35 // pred_fallthru
          _
        // Predicated region
        $region68: #{tpu_custom_call.1} parent=35 // pred_check
          %p2212 = pneg %p147
        $region69: #{tpu_custom_call.1} parent=35 // pred_check_branch
          %2214 = sbr.rel (%p2212) target = $region71
        $region70: #{tpu_custom_call.1} parent=35 // pred_region
          %s2216 = ssub.s32 256, 256
          %2217 = vsyncadd [#allocation15], %s2216
          %s2218 = sshll.u32 [#allocation14], 4
          %s2219 = int_to_ptr.vmem [resolvable:$true] %s2218
          %2224 = dma.vmem_to_hbm [thread:$0]  %s2219, 256, %s5, [#allocation15], 128, 128, 8
        $region71: #{tpu_custom_call.1} parent=35 // pred_fallthru
          _
        // Predicated region
        $region72: #{tpu_custom_call.1} parent=35 // pred_check
          %p2225 = pneg %p126
        $region73: #{tpu_custom_call.1} parent=35 // pred_check_branch
          %2227 = sbr.rel (%p2225) target = $region75
        $region74: #{tpu_custom_call.1} parent=35 // pred_region
          %2228 = dma.done [#allocation7], 256
        $region75: #{tpu_custom_call.1} parent=35 // pred_fallthru
          _
        // Predicated region
        $region76: #{tpu_custom_call.1} parent=35 // pred_check
          %p2229 = pneg %p147
        $region77: #{tpu_custom_call.1} parent=35 // pred_check_branch
          %2231 = sbr.rel (%p2229) target = $region79
        $region78: #{tpu_custom_call.1} parent=35 // pred_region
          %2232 = dma.done [#allocation15], 256
        $region79: #{tpu_custom_call.1} parent=35 // pred_fallthru
          _
      $region36: #{tpu_custom_call.1} parent=5 // pred_fallthru
        _
      %p2233 = scmp.le.s32.totalorder 2, %s19
      // Predicated region
      $region80: #{tpu_custom_call.1} parent=5 // pred_check
        %p2234 = pneg %p2233
      $region81: #{tpu_custom_call.1} parent=5 // pred_check_branch
        %2236 = sbr.rel (%p2234) target = $region83
      $region82: #{tpu_custom_call.1} parent=5 // pred_region
        %s2237 = ssub.s32 %s19, 2
      $region83: #{tpu_custom_call.1} parent=5 // pred_fallthru
        _
    $region6: #{tpu_custom_call.1} parent=1 // loop_footer
      %s23 = sadd.s32 1, %s19
    $region7: #{tpu_custom_call.1} parent=1 // loop_footer_branch
      %18 = sbr.rel target = $region3
    $region8: #{tpu_custom_call.1} parent=1 // loop_exit
      _
    %2238 = vsyncpa [#allocation6], 1
    %s2239 = scalar_lea.sflag [#allocation6], 1
    %2240 = vsyncpa %s2239, 1
    %2241 = vsyncpa [#allocation11], 1
    %2242 = vsyncpa [#allocation7], 1
    %s2243 = scalar_lea.sflag [#allocation7], 1
    %2244 = vsyncpa %s2243, 1
    %2245 = vsyncpa [#allocation15], 1
    %2246 = vsyncpa [#allocation8], 1
    %s2247 = scalar_lea.sflag [#allocation8], 1
    %2248 = vsyncpa %s2247, 1

</llo_original>
